<compile_context>
chip_gen: v5e
topology: v5e:2x2
jax: 0.10.0
libtpu: 0.0.40
codegen_flags: <defaults>
</compile_context>

<pallas_src>
import functools

import jax
import jax.numpy as jnp
from jax.experimental import pallas as pl
from jax.experimental.pallas import tpu as pltpu

# Model hyper-parameters (small, consistent with the module: L, D, K, num_cls).
L = 128                      # feature dim
D = 128                      # gated-attention hidden dim
K = 1                        # attention heads (StainFusion path assumes K == 1)
NUM_CLS = 2
OUT_PAD = 128                # lane-dense padded classifier output width
STAINS = ("HES", "IHC1", "IHC2")
S = len(STAINS)
LN_EPS = 1e-5                # torch.nn.LayerNorm default eps
TN_MAX = 1024                # max instance rows per grid step (multiple of 8)


# ---------------------------------------------------------------------------
# Fused kernel: per-stain gated attention + online-softmax pooling over an
# instance-tiled grid, then (at the last grid step) LayerNorm + StainFusion +
# classifier, all in one pallas_call.
# ---------------------------------------------------------------------------
def _fused_kernel(ns, tns, nblks,
                  x1_ref, x2_ref, x3_ref,
                  wvu_ref, bvu_ref, ww_ref,
                  gamma_ref, beta_ref, wmt_ref, bm_ref,
                  wc_ref, bc_ref,
                  out_ref,
                  m_ref, d_ref, acc_ref):
    i = pl.program_id(0)

    @pl.when(i == 0)
    def _init():
        m_ref[...] = jnp.full_like(m_ref, -1e30)
        d_ref[...] = jnp.zeros_like(d_ref)
        acc_ref[...] = jnp.zeros_like(acc_ref)

    x_refs = (x1_ref, x2_ref, x3_ref)
    for s in range(S):                                   # static unroll, S == 3
        n_s, tn_s, nblk_s = ns[s], tns[s], nblks[s]
        xs = x_refs[s][...]                              # (tn_s, L) instance block

        # Fused V|U projection: ONE (tn_s, L) @ (L, 2D) MXU matmul; the split
        # point (D == 128) is lane-tile aligned, so the slices are free.
        vu = jnp.dot(xs, wvu_ref[...],
                     preferred_element_type=jnp.float32) + bvu_ref[...]
        a_v = jnp.tanh(vu[:, :D])
        a_u = jax.nn.sigmoid(vu[:, D:])

        # K == 1 attention logits: degenerate (D -> 1) contraction kept on the
        # VPU + XLU lane reduce. Bias bw is omitted (softmax shift invariance).
        lg = jnp.sum(a_v * a_u * ww_ref[...], axis=-1, keepdims=True)  # (tn_s, 1)

        # Row validity: the index_map clamps out-of-range block indices back
        # onto this stain's last real block, so repeats / tail padding must
        # contribute exactly zero.
        base = jnp.minimum(i, nblk_s - 1) * tn_s
        row = base + jax.lax.broadcasted_iota(jnp.int32, (tn_s, 1), 0)
        valid = (row < n_s) & (i < nblk_s)
        lg = jnp.where(valid, lg, jnp.float32(-1e30))

        # Online (flash-style) softmax pooling: running max / denom / sum.
        m_old = m_ref[s:s + 1, :]
        m_new = jnp.maximum(m_old, jnp.max(lg, axis=0, keepdims=True))
        alpha = jnp.exp(m_old - m_new)
        e = jnp.exp(lg - m_new)                          # (tn_s, 1) unnormalized
        xs_m = jnp.where(valid, xs, 0.0)                 # zero padded/garbage rows
        d_ref[s:s + 1, :] = (alpha * d_ref[s:s + 1, :]
                             + jnp.sum(e, axis=0, keepdims=True))
        acc_ref[s:s + 1, :] = (alpha * acc_ref[s:s + 1, :]
                               + jnp.sum(e * xs_m, axis=0, keepdims=True))
        m_ref[s:s + 1, :] = m_new

    @pl.when(i == pl.num_programs(0) - 1)
    def _finalize():
        fused = []
        for s in range(S):
            # Normalize the pooled row once (L divides) instead of per instance.
            # approx=True would push this to the EUP but loosens agreement with
            # the f32 reference, so keep the exact reciprocal here.
            inv_d = pl.reciprocal(d_ref[s:s + 1, :], approx=False)
            afeat = acc_ref[s:s + 1, :] * inv_d          # (1, L) pooled feature
            # LayerNorm (biased variance, torch default eps) on the pooled row.
            mu = jnp.mean(afeat, axis=1, keepdims=True)
            var = jnp.mean((afeat - mu) * (afeat - mu), axis=1, keepdims=True)
            fused.append((afeat - mu) * jax.lax.rsqrt(var + LN_EPS)
                         * gamma_ref[...] + beta_ref[...])

        # StainFusion (K == 1: row 0 is HES, remaining rows are the IHC stains).
        hes = fused[0]                                   # (1, L)
        ihcs = jnp.concatenate(fused[1:], axis=0)        # (S-1, L)
        # q = hes @ Wm.T + bm -> output width S-1 == 2: VPU mul + lane reduce.
        q = jnp.sum(hes * wmt_ref[...], axis=-1, keepdims=True) + bm_ref[...]
        # q @ stack(IHCs) -> contraction width 2: VPU mul + sublane reduce.
        qv = jnp.sum(q * ihcs, axis=0, keepdims=True)    # (1, L)
        cls_token = (hes + qv) * 0.5

        # Classifier_1fc (droprate=0): lane-dense padded (1, 128) store.
        out_ref[...] = jnp.dot(cls_token, wc_ref[...],
                               preferred_element_type=jnp.float32) + bc_ref[...]


# ---------------------------------------------------------------------------
# Wrappers
# ---------------------------------------------------------------------------
def prepare_params(p):
    """One-time weight packing. Call ONCE, outside the per-call jit."""
    return {
        # Fused V|U projection: x @ (Wv | Wu) is one 256-wide MXU matmul.
        "wvu": jnp.concatenate([p["wv"], p["wu"]], axis=1),        # (L, 2D)
        "bvu": jnp.concatenate([p["bv"], p["bu"]], axis=1),        # (1, 2D)
        "ww": p["ww"],                                             # (K, D)
        # bw is dropped: adding a constant before softmax is a no-op.
        "gamma": p["gamma"], "beta": p["beta"],                    # (1, L)
        "wmt": p["wm_t"], "bm": p["bm_t"],                         # (S-1, L), (S-1, 1)
        # Lane-dense classifier weights: real columns in [0, NUM_CLS), rest 0.
        "wc": jnp.zeros((L, OUT_PAD), jnp.float32).at[:, :NUM_CLS].set(p["wc"]),
        "bc": jnp.zeros((1, OUT_PAD), jnp.float32).at[:, :NUM_CLS].set(p["bc"]),
    }


@jax.jit
def _forward(kp, x_hes, x_ihc1, x_ihc2):
    xs = (x_hes, x_ihc1, x_ihc2)
    ns = tuple(int(x.shape[0]) for x in xs)
    # Per-stain block size: the whole bag if it fits one block (exact shape,
    # no padding / no masking work), otherwise TN_MAX-row tiles with a masked
    # partial tail block.
    tns = tuple(n if n <= TN_MAX else TN_MAX for n in ns)
    nblks = tuple(pl.cdiv(n, tn) for n, tn in zip(ns, tns))
    grid = (max(nblks),)

    def stain_spec(tn, nblk):
        last = nblk - 1
        return pl.BlockSpec((tn, L),
                            lambda i, _last=last: (jnp.minimum(i, _last), 0))

    def full_spec(arr):
        return pl.BlockSpec(arr.shape, lambda i: (0, 0))

    weights = (kp["wvu"], kp["bvu"], kp["ww"], kp["gamma"], kp["beta"],
               kp["wmt"], kp["bm"], kp["wc"], kp["bc"])

    kernel = functools.partial(_fused_kernel, ns, tns, nblks)
    out = pl.pallas_call(
        kernel,
        out_shape=jax.ShapeDtypeStruct((1, OUT_PAD), jnp.float32),
        grid_spec=pltpu.PrefetchScalarGridSpec(
            num_scalar_prefetch=0,
            grid=grid,
            in_specs=[stain_spec(tn, nblk) for tn, nblk in zip(tns, nblks)]
                     + [full_spec(w) for w in weights],
            out_specs=pl.BlockSpec((1, OUT_PAD), lambda i: (0, 0)),
            scratch_shapes=[pltpu.VMEM((S, 1), jnp.float32),    # running max
                            pltpu.VMEM((S, 1), jnp.float32),    # running denom
                            pltpu.VMEM((S, L), jnp.float32)]),  # running weighted sum
        compiler_params=pltpu.CompilerParams(
            dimension_semantics=("arbitrary",)),
    )(*xs, *weights)
    return out[:, :NUM_CLS]


def attention_with_classifier(x_dict, kp):
    # TODO(synk): distinct bag shapes retrace + recompile this jit; production
    # callers should bucket per-stain N (pad outside this call) to bound the
    # number of compiles on the serving path.
    return _forward(kp, x_dict[STAINS[0]], x_dict[STAINS[1]], x_dict[STAINS[2]])


# Pure-JAX reference (mirrors the PyTorch module) for verification.
def reference_forward(x_dict, p):
    def attn_pool(x):
        av = jnp.tanh(x @ p["wv"] + p["bv"])
        au = jax.nn.sigmoid(x @ p["wu"] + p["bu"])
        a = (av * au) @ p["ww"].T + p["bw"]             # (N, K)
        a = jax.nn.softmax(a.T, axis=1)                 # (K, N)
        return a @ x                                    # (K, L)

    feat = jnp.concatenate([attn_pool(x_dict[s]) for s in STAINS], axis=0)
    mu = feat.mean(axis=1, keepdims=True)
    var = ((feat - mu) ** 2).mean(axis=1, keepdims=True)
    fn = (feat - mu) / jnp.sqrt(var + LN_EPS) * p["gamma"] + p["beta"]
    hes, ihcs = fn[0:1], fn[1:]
    q = hes @ p["wm_t"].T + p["bm_t"].T                 # (1, S-1)
    cls = (hes + q @ ihcs) / 2.0
    return cls @ p["wc"] + p["bc"]


def init_params(key):
    ks = jax.random.split(key, 12)
    s = 0.02
    return {
        # Attention_Gated
        "wv": jax.random.normal(ks[0], (L, D), jnp.float32) * s,
        "bv": jax.random.normal(ks[1], (1, D), jnp.float32) * s,
        "wu": jax.random.normal(ks[2], (L, D), jnp.float32) * s,
        "bu": jax.random.normal(ks[3], (1, D), jnp.float32) * s,
        "ww": jax.random.normal(ks[4], (K, D), jnp.float32) * s,       # (1, D)
        "bw": jax.random.normal(ks[5], (1, K), jnp.float32) * s,       # (1, 1)
        # StainFusion (LayerNorm + mlp in PyTorch (out, in) layout)
        "gamma": 1.0 + jax.random.normal(ks[6], (1, L), jnp.float32) * s,
        "beta": jax.random.normal(ks[7], (1, L), jnp.float32) * s,
        "wm_t": jax.random.normal(ks[8], (S - 1, L), jnp.float32) * s,
        "bm_t": jax.random.normal(ks[9], (S - 1, 1), jnp.float32) * s,
        # Classifier_1fc
        "wc": jax.random.normal(ks[10], (L, NUM_CLS), jnp.float32) * s,
        "bc": jax.random.normal(ks[11], (1, NUM_CLS), jnp.float32) * s,
    }


if __name__ == "__main__":
    key = jax.random.PRNGKey(0)
    k_params, k_h, k_i1, k_i2 = jax.random.split(key, 4)
    params = init_params(k_params)
    kparams = prepare_params(params)      # one-time packing, outside the jit

    # Small per-stain bags (different N per stain, as in real MIL bags).
    x = {
        "HES":  jax.random.normal(k_h,  (12, L), jnp.float32),
        "IHC1": jax.random.normal(k_i1, (8,  L), jnp.float32),
        "IHC2": jax.random.normal(k_i2, (10, L), jnp.float32),
    }

    pred = attention_with_classifier(x, kparams)
    pred = jax.block_until_ready(pred)

    ref = reference_forward(x, params)
    assert pred.shape == (1, NUM_CLS)
    assert jnp.allclose(pred, ref, rtol=1e-3, atol=1e-4), (pred, ref)

    print("KERNEL_OK")
</pallas_src>

<mosaic_0001>
module attributes {stable_mosaic.version = 11 : i64} {
  func.func @_fused_kernel(%arg0: i32, %arg1: memref<12x128xf32, #tpu.memory_space<vmem>>, %arg2: memref<8x128xf32, #tpu.memory_space<vmem>>, %arg3: memref<10x128xf32, #tpu.memory_space<vmem>>, %arg4: memref<128x256xf32, #tpu.memory_space<vmem>>, %arg5: memref<1x256xf32, #tpu.memory_space<vmem>>, %arg6: memref<1x128xf32, #tpu.memory_space<vmem>>, %arg7: memref<1x128xf32, #tpu.memory_space<vmem>>, %arg8: memref<1x128xf32, #tpu.memory_space<vmem>>, %arg9: memref<2x128xf32, #tpu.memory_space<vmem>>, %arg10: memref<2x1xf32, #tpu.memory_space<vmem>>, %arg11: memref<128x128xf32, #tpu.memory_space<vmem>>, %arg12: memref<1x128xf32, #tpu.memory_space<vmem>>, %arg13: memref<1x128xf32, #tpu.memory_space<vmem>>, %arg14: memref<3x1xf32, #tpu.memory_space<vmem>>, %arg15: memref<3x1xf32, #tpu.memory_space<vmem>>, %arg16: memref<3x128xf32, #tpu.memory_space<vmem>>) attributes {dimension_semantics = [#tpu.dimension_semantics<arbitrary>], iteration_bounds = array<i64: 1>, scalar_prefetch = 0 : i64, scratch_operands = 3 : i64, tpu.core_type = #tpu.core_type<tc>, window_params = [{transform_indices = @transform_0, window_bounds = array<i64: 12, 128>}, {transform_indices = @transform_1, window_bounds = array<i64: 8, 128>}, {transform_indices = @transform_2, window_bounds = array<i64: 10, 128>}, {pipeline_mode = #tpu.pipeline_mode<synchronous>, transform_indices = @transform_3, window_bounds = array<i64: 128, 256>}, {pipeline_mode = #tpu.pipeline_mode<synchronous>, transform_indices = @transform_4, window_bounds = array<i64: 1, 256>}, {pipeline_mode = #tpu.pipeline_mode<synchronous>, transform_indices = @transform_5, window_bounds = array<i64: 1, 128>}, {pipeline_mode = #tpu.pipeline_mode<synchronous>, transform_indices = @transform_6, window_bounds = array<i64: 1, 128>}, {pipeline_mode = #tpu.pipeline_mode<synchronous>, transform_indices = @transform_7, window_bounds = array<i64: 1, 128>}, {pipeline_mode = #tpu.pipeline_mode<synchronous>, transform_indices = @transform_8, window_bounds = array<i64: 2, 128>}, {pipeline_mode = #tpu.pipeline_mode<synchronous>, transform_indices = @transform_9, window_bounds = array<i64: 2, 1>}, {pipeline_mode = #tpu.pipeline_mode<synchronous>, transform_indices = @transform_10, window_bounds = array<i64: 128, 128>}, {pipeline_mode = #tpu.pipeline_mode<synchronous>, transform_indices = @transform_11, window_bounds = array<i64: 1, 128>}, {pipeline_mode = #tpu.pipeline_mode<synchronous>, transform_indices = @transform_12, window_bounds = array<i64: 1, 128>}]} {
    %c0_i32 = arith.constant 0 : i32
    %0 = arith.cmpi eq, %arg0, %c0_i32 : i32
    %1 = arith.extui %0 : i1 to i32
    %c0_i32_0 = arith.constant 0 : i32
    %2 = arith.cmpi ne, %1, %c0_i32_0 : i32
    scf.if %2 {
      %cst_91 = arith.constant -1.000000e+30 : f32
      %189 = vector.broadcast %cst_91 : f32 to vector<3x1xf32>
      %c0_92 = arith.constant 0 : index
      %c0_93 = arith.constant 0 : index
      %190 = vector.load %arg14[%c0_92, %c0_93] : memref<3x1xf32, #tpu.memory_space<vmem>>, vector<3x1xf32>
      tpu.vector_store %arg14[%c0_92, %c0_93], %189 {strides = array<i32>} : memref<3x1xf32, #tpu.memory_space<vmem>>, vector<3x1xf32>,
      %cst_94 = arith.constant 0.000000e+00 : f32
      %191 = vector.broadcast %cst_94 : f32 to vector<3x1xf32>
      %c0_95 = arith.constant 0 : index
      %c0_96 = arith.constant 0 : index
      %192 = vector.load %arg15[%c0_95, %c0_96] : memref<3x1xf32, #tpu.memory_space<vmem>>, vector<3x1xf32>
      tpu.vector_store %arg15[%c0_95, %c0_96], %191 {strides = array<i32>} : memref<3x1xf32, #tpu.memory_space<vmem>>, vector<3x1xf32>,
      %cst_97 = arith.constant 0.000000e+00 : f32
      %193 = vector.broadcast %cst_97 : f32 to vector<3x128xf32>
      %c0_98 = arith.constant 0 : index
      %c0_99 = arith.constant 0 : index
      %194 = vector.load %arg16[%c0_98, %c0_99] : memref<3x128xf32, #tpu.memory_space<vmem>>, vector<3x128xf32>
      tpu.vector_store %arg16[%c0_98, %c0_99], %193 {strides = array<i32>} : memref<3x128xf32, #tpu.memory_space<vmem>>, vector<3x128xf32>,
    } else {
    }
    %c0 = arith.constant 0 : index
    %c0_1 = arith.constant 0 : index
    %3 = vector.load %arg1[%c0, %c0_1] : memref<12x128xf32, #tpu.memory_space<vmem>>, vector<12x128xf32>
    %c0_2 = arith.constant 0 : index
    %c0_3 = arith.constant 0 : index
    %4 = vector.load %arg4[%c0_2, %c0_3] : memref<128x256xf32, #tpu.memory_space<vmem>>, vector<128x256xf32>
    %cst = arith.constant dense<0.000000e+00> : vector<12x256xf32>
    %5 = tpu.matmul %3, %4, %cst {dimension_numbers = #tpu.dot_dimension_numbers<[1], [0], [0], [1], [0, 0, 1, 1], [], []>} : vector<12x128xf32>, vector<128x256xf32>, vector<12x256xf32> -> vector<12x256xf32>
    %c0_4 = arith.constant 0 : index
    %c0_5 = arith.constant 0 : index
    %6 = vector.load %arg5[%c0_4, %c0_5] : memref<1x256xf32, #tpu.memory_space<vmem>>, vector<1x256xf32>
    %7 = vector.broadcast %6 : vector<1x256xf32> to vector<12x256xf32>
    %8 = arith.addf %5, %7 : vector<12x256xf32>
    %9 = vector.extract_strided_slice %8 {offsets = [0, 0], sizes = [12, 128], strides = [1, 1]} : vector<12x256xf32> to vector<12x128xf32>
    %10 = math.tanh %9 : vector<12x128xf32>
    %11 = vector.extract_strided_slice %8 {offsets = [0, 128], sizes = [12, 128], strides = [1, 1]} : vector<12x256xf32> to vector<12x128xf32>
    %12 = arith.negf %11 : vector<12x128xf32>
    %13 = math.exp %12 : vector<12x128xf32>
    %cst_6 = arith.constant 1.000000e+00 : f32
    %14 = vector.broadcast %cst_6 : f32 to vector<12x128xf32>
    %15 = arith.addf %14, %13 : vector<12x128xf32>
    %16 = arith.divf %14, %15 : vector<12x128xf32>
    %17 = arith.mulf %10, %16 : vector<12x128xf32>
    %c0_7 = arith.constant 0 : index
    %c0_8 = arith.constant 0 : index
    %18 = vector.load %arg6[%c0_7, %c0_8] : memref<1x128xf32, #tpu.memory_space<vmem>>, vector<1x128xf32>
    %19 = vector.broadcast %18 : vector<1x128xf32> to vector<12x128xf32>
    %20 = arith.mulf %17, %19 : vector<12x128xf32>
    %cst_9 = arith.constant dense<0.000000e+00> : vector<12xf32>
    %21 = vector.multi_reduction <add>, %20, %cst_9 [1] : vector<12x128xf32> to vector<12xf32>
    %22 = vector.shape_cast %21 : vector<12xf32> to vector<12x1xf32>
    %c0_i32_10 = arith.constant 0 : i32
    %23 = arith.minsi %arg0, %c0_i32_10 : i32
    %c12_i32 = arith.constant 12 : i32
    %24 = arith.muli %23, %c12_i32 : i32
    %25 = tpu.iota {dimensions = array<i32: 0>} : vector<12x1xi32>
    %26 = vector.broadcast %24 : i32 to vector<12x1xi32>
    %27 = arith.addi %26, %25 : vector<12x1xi32>
    %c12_i32_11 = arith.constant 12 : i32
    %28 = vector.broadcast %c12_i32_11 : i32 to vector<12x1xi32>
    %29 = arith.cmpi slt, %27, %28 : vector<12x1xi32>
    %c1_i32 = arith.constant 1 : i32
    %30 = arith.cmpi slt, %arg0, %c1_i32 : i32
    %31 = vector.broadcast %30 : i1 to vector<12x1xi1>
    %32 = arith.andi %29, %31 : vector<12x1xi1>
    %cst_12 = arith.constant -1.000000e+30 : f32
    %33 = vector.broadcast %cst_12 : f32 to vector<12x1xf32>
    %34 = arith.select %32, %22, %33 : vector<12x1xi1>, vector<12x1xf32>
    %c0_13 = arith.constant 0 : index
    %c0_14 = arith.constant 0 : index
    %35 = vector.load %arg14[%c0_13, %c0_14] : memref<3x1xf32, #tpu.memory_space<vmem>>, vector<1x1xf32>
    %cst_15 = arith.constant dense<0xFF800000> : vector<1xf32>
    %36 = vector.multi_reduction <maximumf>, %34, %cst_15 [0] : vector<12x1xf32> to vector<1xf32>
    %37 = vector.shape_cast %36 : vector<1xf32> to vector<1x1xf32>
    %38 = arith.maximumf %35, %37 : vector<1x1xf32>
    %39 = arith.subf %35, %38 : vector<1x1xf32>
    %40 = math.exp %39 : vector<1x1xf32>
    %41 = vector.broadcast %38 : vector<1x1xf32> to vector<12x1xf32>
    %42 = arith.subf %34, %41 : vector<12x1xf32>
    %43 = math.exp %42 : vector<12x1xf32>
    %cst_16 = arith.constant 0.000000e+00 : f32
    %44 = vector.shape_cast %32 : vector<12x1xi1> to vector<12x1xi1>
    %45 = vector.broadcast %44 : vector<12x1xi1> to vector<12x128xi1>
    %46 = vector.broadcast %cst_16 : f32 to vector<12x128xf32>
    %47 = arith.select %45, %3, %46 : vector<12x128xi1>, vector<12x128xf32>
    %c0_17 = arith.constant 0 : index
    %c0_18 = arith.constant 0 : index
    %48 = vector.load %arg15[%c0_17, %c0_18] : memref<3x1xf32, #tpu.memory_space<vmem>>, vector<1x1xf32>
    %49 = arith.mulf %40, %48 : vector<1x1xf32>
    %cst_19 = arith.constant dense<0.000000e+00> : vector<1xf32>
    %50 = vector.multi_reduction <add>, %43, %cst_19 [0] : vector<12x1xf32> to vector<1xf32>
    %51 = vector.shape_cast %50 : vector<1xf32> to vector<1x1xf32>
    %52 = arith.addf %49, %51 : vector<1x1xf32>
    %c0_20 = arith.constant 0 : index
    %c0_21 = arith.constant 0 : index
    %53 = vector.load %arg15[%c0_20, %c0_21] : memref<3x1xf32, #tpu.memory_space<vmem>>, vector<1x1xf32>
    tpu.vector_store %arg15[%c0_20, %c0_21], %52 {strides = array<i32>} : memref<3x1xf32, #tpu.memory_space<vmem>>, vector<1x1xf32>,
    %c0_22 = arith.constant 0 : index
    %c0_23 = arith.constant 0 : index
    %54 = vector.load %arg16[%c0_22, %c0_23] : memref<3x128xf32, #tpu.memory_space<vmem>>, vector<1x128xf32>
    %55 = vector.broadcast %40 : vector<1x1xf32> to vector<1x128xf32>
    %56 = arith.mulf %55, %54 : vector<1x128xf32>
    %57 = vector.broadcast %43 : vector<12x1xf32> to vector<12x128xf32>
    %58 = arith.mulf %57, %47 : vector<12x128xf32>
    %cst_24 = arith.constant dense<0.000000e+00> : vector<128xf32>
    %59 = vector.multi_reduction <add>, %58, %cst_24 [0] : vector<12x128xf32> to vector<128xf32>
    %60 = vector.shape_cast %59 : vector<128xf32> to vector<1x128xf32>
    %61 = arith.addf %56, %60 : vector<1x128xf32>
    %c0_25 = arith.constant 0 : index
    %c0_26 = arith.constant 0 : index
    %62 = vector.load %arg16[%c0_25, %c0_26] : memref<3x128xf32, #tpu.memory_space<vmem>>, vector<1x128xf32>
    tpu.vector_store %arg16[%c0_25, %c0_26], %61 {strides = array<i32>} : memref<3x128xf32, #tpu.memory_space<vmem>>, vector<1x128xf32>,
    %c0_27 = arith.constant 0 : index
    %c0_28 = arith.constant 0 : index
    %63 = vector.load %arg14[%c0_27, %c0_28] : memref<3x1xf32, #tpu.memory_space<vmem>>, vector<1x1xf32>
    tpu.vector_store %arg14[%c0_27, %c0_28], %38 {strides = array<i32>} : memref<3x1xf32, #tpu.memory_space<vmem>>, vector<1x1xf32>,
    %c0_29 = arith.constant 0 : index
    %c0_30 = arith.constant 0 : index
    %64 = vector.load %arg2[%c0_29, %c0_30] : memref<8x128xf32, #tpu.memory_space<vmem>>, vector<8x128xf32>
    %c0_31 = arith.constant 0 : index
    %c0_32 = arith.constant 0 : index
    %65 = vector.load %arg4[%c0_31, %c0_32] : memref<128x256xf32, #tpu.memory_space<vmem>>, vector<128x256xf32>
    %cst_33 = arith.constant dense<0.000000e+00> : vector<8x256xf32>
    %66 = tpu.matmul %64, %65, %cst_33 {dimension_numbers = #tpu.dot_dimension_numbers<[1], [0], [0], [1], [0, 0, 1, 1], [], []>} : vector<8x128xf32>, vector<128x256xf32>, vector<8x256xf32> -> vector<8x256xf32>
    %c0_34 = arith.constant 0 : index
    %c0_35 = arith.constant 0 : index
    %67 = vector.load %arg5[%c0_34, %c0_35] : memref<1x256xf32, #tpu.memory_space<vmem>>, vector<1x256xf32>
    %68 = vector.broadcast %67 : vector<1x256xf32> to vector<8x256xf32>
    %69 = arith.addf %66, %68 : vector<8x256xf32>
    %70 = vector.extract_strided_slice %69 {offsets = [0, 0], sizes = [8, 128], strides = [1, 1]} : vector<8x256xf32> to vector<8x128xf32>
    %71 = math.tanh %70 : vector<8x128xf32>
    %72 = vector.extract_strided_slice %69 {offsets = [0, 128], sizes = [8, 128], strides = [1, 1]} : vector<8x256xf32> to vector<8x128xf32>
    %73 = arith.negf %72 : vector<8x128xf32>
    %74 = math.exp %73 : vector<8x128xf32>
    %cst_36 = arith.constant 1.000000e+00 : f32
    %75 = vector.broadcast %cst_36 : f32 to vector<8x128xf32>
    %76 = arith.addf %75, %74 : vector<8x128xf32>
    %77 = arith.divf %75, %76 : vector<8x128xf32>
    %78 = arith.mulf %71, %77 : vector<8x128xf32>
    %c0_37 = arith.constant 0 : index
    %c0_38 = arith.constant 0 : index
    %79 = vector.load %arg6[%c0_37, %c0_38] : memref<1x128xf32, #tpu.memory_space<vmem>>, vector<1x128xf32>
    %80 = vector.broadcast %79 : vector<1x128xf32> to vector<8x128xf32>
    %81 = arith.mulf %78, %80 : vector<8x128xf32>
    %cst_39 = arith.constant dense<0.000000e+00> : vector<8xf32>
    %82 = vector.multi_reduction <add>, %81, %cst_39 [1] : vector<8x128xf32> to vector<8xf32>
    %83 = vector.shape_cast %82 : vector<8xf32> to vector<8x1xf32>
    %c0_i32_40 = arith.constant 0 : i32
    %84 = arith.minsi %arg0, %c0_i32_40 : i32
    %c8_i32 = arith.constant 8 : i32
    %85 = arith.muli %84, %c8_i32 : i32
    %86 = tpu.iota {dimensions = array<i32: 0>} : vector<8x1xi32>
    %87 = vector.broadcast %85 : i32 to vector<8x1xi32>
    %88 = arith.addi %87, %86 : vector<8x1xi32>
    %c8_i32_41 = arith.constant 8 : i32
    %89 = vector.broadcast %c8_i32_41 : i32 to vector<8x1xi32>
    %90 = arith.cmpi slt, %88, %89 : vector<8x1xi32>
    %c1_i32_42 = arith.constant 1 : i32
    %91 = arith.cmpi slt, %arg0, %c1_i32_42 : i32
    %92 = vector.broadcast %91 : i1 to vector<8x1xi1>
    %93 = arith.andi %90, %92 : vector<8x1xi1>
    %cst_43 = arith.constant -1.000000e+30 : f32
    %94 = vector.broadcast %cst_43 : f32 to vector<8x1xf32>
    %95 = arith.select %93, %83, %94 : vector<8x1xi1>, vector<8x1xf32>
    %c1 = arith.constant 1 : index
    %c0_44 = arith.constant 0 : index
    %96 = vector.load %arg14[%c1, %c0_44] : memref<3x1xf32, #tpu.memory_space<vmem>>, vector<1x1xf32>
    %cst_45 = arith.constant dense<0xFF800000> : vector<1xf32>
    %97 = vector.multi_reduction <maximumf>, %95, %cst_45 [0] : vector<8x1xf32> to vector<1xf32>
    %98 = vector.shape_cast %97 : vector<1xf32> to vector<1x1xf32>
    %99 = arith.maximumf %96, %98 : vector<1x1xf32>
    %100 = arith.subf %96, %99 : vector<1x1xf32>
    %101 = math.exp %100 : vector<1x1xf32>
    %102 = vector.broadcast %99 : vector<1x1xf32> to vector<8x1xf32>
    %103 = arith.subf %95, %102 : vector<8x1xf32>
    %104 = math.exp %103 : vector<8x1xf32>
    %cst_46 = arith.constant 0.000000e+00 : f32
    %105 = vector.shape_cast %93 : vector<8x1xi1> to vector<8x1xi1>
    %106 = vector.broadcast %105 : vector<8x1xi1> to vector<8x128xi1>
    %107 = vector.broadcast %cst_46 : f32 to vector<8x128xf32>
    %108 = arith.select %106, %64, %107 : vector<8x128xi1>, vector<8x128xf32>
    %c1_47 = arith.constant 1 : index
    %c0_48 = arith.constant 0 : index
    %109 = vector.load %arg15[%c1_47, %c0_48] : memref<3x1xf32, #tpu.memory_space<vmem>>, vector<1x1xf32>
    %110 = arith.mulf %101, %109 : vector<1x1xf32>
    %cst_49 = arith.constant dense<0.000000e+00> : vector<1xf32>
    %111 = vector.multi_reduction <add>, %104, %cst_49 [0] : vector<8x1xf32> to vector<1xf32>
    %112 = vector.shape_cast %111 : vector<1xf32> to vector<1x1xf32>
    %113 = arith.addf %110, %112 : vector<1x1xf32>
    %c1_50 = arith.constant 1 : index
    %c0_51 = arith.constant 0 : index
    %114 = vector.load %arg15[%c1_50, %c0_51] : memref<3x1xf32, #tpu.memory_space<vmem>>, vector<1x1xf32>
    tpu.vector_store %arg15[%c1_50, %c0_51], %113 {strides = array<i32>} : memref<3x1xf32, #tpu.memory_space<vmem>>, vector<1x1xf32>,
    %c1_52 = arith.constant 1 : index
    %c0_53 = arith.constant 0 : index
    %115 = vector.load %arg16[%c1_52, %c0_53] : memref<3x128xf32, #tpu.memory_space<vmem>>, vector<1x128xf32>
    %116 = vector.broadcast %101 : vector<1x1xf32> to vector<1x128xf32>
    %117 = arith.mulf %116, %115 : vector<1x128xf32>
    %118 = vector.broadcast %104 : vector<8x1xf32> to vector<8x128xf32>
    %119 = arith.mulf %118, %108 : vector<8x128xf32>
    %cst_54 = arith.constant dense<0.000000e+00> : vector<128xf32>
    %120 = vector.multi_reduction <add>, %119, %cst_54 [0] : vector<8x128xf32> to vector<128xf32>
    %121 = vector.shape_cast %120 : vector<128xf32> to vector<1x128xf32>
    %122 = arith.addf %117, %121 : vector<1x128xf32>
    %c1_55 = arith.constant 1 : index
    %c0_56 = arith.constant 0 : index
    %123 = vector.load %arg16[%c1_55, %c0_56] : memref<3x128xf32, #tpu.memory_space<vmem>>, vector<1x128xf32>
    tpu.vector_store %arg16[%c1_55, %c0_56], %122 {strides = array<i32>} : memref<3x128xf32, #tpu.memory_space<vmem>>, vector<1x128xf32>,
    %c1_57 = arith.constant 1 : index
    %c0_58 = arith.constant 0 : index
    %124 = vector.load %arg14[%c1_57, %c0_58] : memref<3x1xf32, #tpu.memory_space<vmem>>, vector<1x1xf32>
    tpu.vector_store %arg14[%c1_57, %c0_58], %99 {strides = array<i32>} : memref<3x1xf32, #tpu.memory_space<vmem>>, vector<1x1xf32>,
    %c0_59 = arith.constant 0 : index
    %c0_60 = arith.constant 0 : index
    %125 = vector.load %arg3[%c0_59, %c0_60] : memref<10x128xf32, #tpu.memory_space<vmem>>, vector<10x128xf32>
    %c0_61 = arith.constant 0 : index
    %c0_62 = arith.constant 0 : index
    %126 = vector.load %arg4[%c0_61, %c0_62] : memref<128x256xf32, #tpu.memory_space<vmem>>, vector<128x256xf32>
    %cst_63 = arith.constant dense<0.000000e+00> : vector<10x256xf32>
    %127 = tpu.matmul %125, %126, %cst_63 {dimension_numbers = #tpu.dot_dimension_numbers<[1], [0], [0], [1], [0, 0, 1, 1], [], []>} : vector<10x128xf32>, vector<128x256xf32>, vector<10x256xf32> -> vector<10x256xf32>
    %c0_64 = arith.constant 0 : index
    %c0_65 = arith.constant 0 : index
    %128 = vector.load %arg5[%c0_64, %c0_65] : memref<1x256xf32, #tpu.memory_space<vmem>>, vector<1x256xf32>
    %129 = vector.broadcast %128 : vector<1x256xf32> to vector<10x256xf32>
    %130 = arith.addf %127, %129 : vector<10x256xf32>
    %131 = vector.extract_strided_slice %130 {offsets = [0, 0], sizes = [10, 128], strides = [1, 1]} : vector<10x256xf32> to vector<10x128xf32>
    %132 = math.tanh %131 : vector<10x128xf32>
    %133 = vector.extract_strided_slice %130 {offsets = [0, 128], sizes = [10, 128], strides = [1, 1]} : vector<10x256xf32> to vector<10x128xf32>
    %134 = arith.negf %133 : vector<10x128xf32>
    %135 = math.exp %134 : vector<10x128xf32>
    %cst_66 = arith.constant 1.000000e+00 : f32
    %136 = vector.broadcast %cst_66 : f32 to vector<10x128xf32>
    %137 = arith.addf %136, %135 : vector<10x128xf32>
    %138 = arith.divf %136, %137 : vector<10x128xf32>
    %139 = arith.mulf %132, %138 : vector<10x128xf32>
    %c0_67 = arith.constant 0 : index
    %c0_68 = arith.constant 0 : index
    %140 = vector.load %arg6[%c0_67, %c0_68] : memref<1x128xf32, #tpu.memory_space<vmem>>, vector<1x128xf32>
    %141 = vector.broadcast %140 : vector<1x128xf32> to vector<10x128xf32>
    %142 = arith.mulf %139, %141 : vector<10x128xf32>
    %cst_69 = arith.constant dense<0.000000e+00> : vector<10xf32>
    %143 = vector.multi_reduction <add>, %142, %cst_69 [1] : vector<10x128xf32> to vector<10xf32>
    %144 = vector.shape_cast %143 : vector<10xf32> to vector<10x1xf32>
    %c0_i32_70 = arith.constant 0 : i32
    %145 = arith.minsi %arg0, %c0_i32_70 : i32
    %c10_i32 = arith.constant 10 : i32
    %146 = arith.muli %145, %c10_i32 : i32
    %147 = tpu.iota {dimensions = array<i32: 0>} : vector<10x1xi32>
    %148 = vector.broadcast %146 : i32 to vector<10x1xi32>
    %149 = arith.addi %148, %147 : vector<10x1xi32>
    %c10_i32_71 = arith.constant 10 : i32
    %150 = vector.broadcast %c10_i32_71 : i32 to vector<10x1xi32>
    %151 = arith.cmpi slt, %149, %150 : vector<10x1xi32>
    %c1_i32_72 = arith.constant 1 : i32
    %152 = arith.cmpi slt, %arg0, %c1_i32_72 : i32
    %153 = vector.broadcast %152 : i1 to vector<10x1xi1>
    %154 = arith.andi %151, %153 : vector<10x1xi1>
    %cst_73 = arith.constant -1.000000e+30 : f32
    %155 = vector.broadcast %cst_73 : f32 to vector<10x1xf32>
    %156 = arith.select %154, %144, %155 : vector<10x1xi1>, vector<10x1xf32>
    %c2 = arith.constant 2 : index
    %c0_74 = arith.constant 0 : index
    %157 = vector.load %arg14[%c2, %c0_74] : memref<3x1xf32, #tpu.memory_space<vmem>>, vector<1x1xf32>
    %cst_75 = arith.constant dense<0xFF800000> : vector<1xf32>
    %158 = vector.multi_reduction <maximumf>, %156, %cst_75 [0] : vector<10x1xf32> to vector<1xf32>
    %159 = vector.shape_cast %158 : vector<1xf32> to vector<1x1xf32>
    %160 = arith.maximumf %157, %159 : vector<1x1xf32>
    %161 = arith.subf %157, %160 : vector<1x1xf32>
    %162 = math.exp %161 : vector<1x1xf32>
    %163 = vector.broadcast %160 : vector<1x1xf32> to vector<10x1xf32>
    %164 = arith.subf %156, %163 : vector<10x1xf32>
    %165 = math.exp %164 : vector<10x1xf32>
    %cst_76 = arith.constant 0.000000e+00 : f32
    %166 = vector.shape_cast %154 : vector<10x1xi1> to vector<10x1xi1>
    %167 = vector.broadcast %166 : vector<10x1xi1> to vector<10x128xi1>
    %168 = vector.broadcast %cst_76 : f32 to vector<10x128xf32>
    %169 = arith.select %167, %125, %168 : vector<10x128xi1>, vector<10x128xf32>
    %c2_77 = arith.constant 2 : index
    %c0_78 = arith.constant 0 : index
    %170 = vector.load %arg15[%c2_77, %c0_78] : memref<3x1xf32, #tpu.memory_space<vmem>>, vector<1x1xf32>
    %171 = arith.mulf %162, %170 : vector<1x1xf32>
    %cst_79 = arith.constant dense<0.000000e+00> : vector<1xf32>
    %172 = vector.multi_reduction <add>, %165, %cst_79 [0] : vector<10x1xf32> to vector<1xf32>
    %173 = vector.shape_cast %172 : vector<1xf32> to vector<1x1xf32>
    %174 = arith.addf %171, %173 : vector<1x1xf32>
    %c2_80 = arith.constant 2 : index
    %c0_81 = arith.constant 0 : index
    %175 = vector.load %arg15[%c2_80, %c0_81] : memref<3x1xf32, #tpu.memory_space<vmem>>, vector<1x1xf32>
    tpu.vector_store %arg15[%c2_80, %c0_81], %174 {strides = array<i32>} : memref<3x1xf32, #tpu.memory_space<vmem>>, vector<1x1xf32>,
    %c2_82 = arith.constant 2 : index
    %c0_83 = arith.constant 0 : index
    %176 = vector.load %arg16[%c2_82, %c0_83] : memref<3x128xf32, #tpu.memory_space<vmem>>, vector<1x128xf32>
    %177 = vector.broadcast %162 : vector<1x1xf32> to vector<1x128xf32>
    %178 = arith.mulf %177, %176 : vector<1x128xf32>
    %179 = vector.broadcast %165 : vector<10x1xf32> to vector<10x128xf32>
    %180 = arith.mulf %179, %169 : vector<10x128xf32>
    %cst_84 = arith.constant dense<0.000000e+00> : vector<128xf32>
    %181 = vector.multi_reduction <add>, %180, %cst_84 [0] : vector<10x128xf32> to vector<128xf32>
    %182 = vector.shape_cast %181 : vector<128xf32> to vector<1x128xf32>
    %183 = arith.addf %178, %182 : vector<1x128xf32>
    %c2_85 = arith.constant 2 : index
    %c0_86 = arith.constant 0 : index
    %184 = vector.load %arg16[%c2_85, %c0_86] : memref<3x128xf32, #tpu.memory_space<vmem>>, vector<1x128xf32>
    tpu.vector_store %arg16[%c2_85, %c0_86], %183 {strides = array<i32>} : memref<3x128xf32, #tpu.memory_space<vmem>>, vector<1x128xf32>,
    %c2_87 = arith.constant 2 : index
    %c0_88 = arith.constant 0 : index
    %185 = vector.load %arg14[%c2_87, %c0_88] : memref<3x1xf32, #tpu.memory_space<vmem>>, vector<1x1xf32>
    tpu.vector_store %arg14[%c2_87, %c0_88], %160 {strides = array<i32>} : memref<3x1xf32, #tpu.memory_space<vmem>>, vector<1x1xf32>,
    %c0_i32_89 = arith.constant 0 : i32
    %186 = arith.cmpi eq, %arg0, %c0_i32_89 : i32
    %187 = arith.extui %186 : i1 to i32
    %c0_i32_90 = arith.constant 0 : i32
    %188 = arith.cmpi ne, %187, %c0_i32_90 : i32
    scf.if %188 {
      %c0_91 = arith.constant 0 : index
      %c0_92 = arith.constant 0 : index
      %189 = vector.load %arg15[%c0_91, %c0_92] : memref<3x1xf32, #tpu.memory_space<vmem>>, vector<1x1xf32>
      %190 = tpu.reciprocal %189 : vector<1x1xf32> -> vector<1x1xf32>
      %c0_93 = arith.constant 0 : index
      %c0_94 = arith.constant 0 : index
      %191 = vector.load %arg16[%c0_93, %c0_94] : memref<3x128xf32, #tpu.memory_space<vmem>>, vector<1x128xf32>
      %192 = vector.broadcast %190 : vector<1x1xf32> to vector<1x128xf32>
      %193 = arith.mulf %191, %192 : vector<1x128xf32>
      %cst_95 = arith.constant dense<0.000000e+00> : vector<1xf32>
      %194 = vector.multi_reduction <add>, %193, %cst_95 [1] : vector<1x128xf32> to vector<1xf32>
      %195 = vector.shape_cast %194 : vector<1xf32> to vector<1x1xf32>
      %cst_96 = arith.constant 1.280000e+02 : f32
      %196 = vector.broadcast %cst_96 : f32 to vector<1x1xf32>
      %197 = arith.divf %195, %196 : vector<1x1xf32>
      %198 = vector.broadcast %197 : vector<1x1xf32> to vector<1x128xf32>
      %199 = arith.subf %193, %198 : vector<1x128xf32>
      %200 = vector.broadcast %197 : vector<1x1xf32> to vector<1x128xf32>
      %201 = arith.subf %193, %200 : vector<1x128xf32>
      %202 = arith.mulf %199, %201 : vector<1x128xf32>
      %cst_97 = arith.constant dense<0.000000e+00> : vector<1xf32>
      %203 = vector.multi_reduction <add>, %202, %cst_97 [1] : vector<1x128xf32> to vector<1xf32>
      %204 = vector.shape_cast %203 : vector<1xf32> to vector<1x1xf32>
      %cst_98 = arith.constant 1.280000e+02 : f32
      %205 = vector.broadcast %cst_98 : f32 to vector<1x1xf32>
      %206 = arith.divf %204, %205 : vector<1x1xf32>
      %207 = vector.broadcast %197 : vector<1x1xf32> to vector<1x128xf32>
      %208 = arith.subf %193, %207 : vector<1x128xf32>
      %cst_99 = arith.constant 9.99999974E-6 : f32
      %209 = vector.broadcast %cst_99 : f32 to vector<1x1xf32>
      %210 = arith.addf %206, %209 : vector<1x1xf32>
      %211 = math.rsqrt %210 : vector<1x1xf32>
      %212 = vector.broadcast %211 : vector<1x1xf32> to vector<1x128xf32>
      %213 = arith.mulf %208, %212 : vector<1x128xf32>
      %c0_100 = arith.constant 0 : index
      %c0_101 = arith.constant 0 : index
      %214 = vector.load %arg7[%c0_100, %c0_101] : memref<1x128xf32, #tpu.memory_space<vmem>>, vector<1x128xf32>
      %215 = arith.mulf %213, %214 : vector<1x128xf32>
      %c0_102 = arith.constant 0 : index
      %c0_103 = arith.constant 0 : index
      %216 = vector.load %arg8[%c0_102, %c0_103] : memref<1x128xf32, #tpu.memory_space<vmem>>, vector<1x128xf32>
      %217 = arith.addf %215, %216 : vector<1x128xf32>
      %c1_104 = arith.constant 1 : index
      %c0_105 = arith.constant 0 : index
      %218 = vector.load %arg15[%c1_104, %c0_105] : memref<3x1xf32, #tpu.memory_space<vmem>>, vector<1x1xf32>
      %219 = tpu.reciprocal %218 : vector<1x1xf32> -> vector<1x1xf32>
      %c1_106 = arith.constant 1 : index
      %c0_107 = arith.constant 0 : index
      %220 = vector.load %arg16[%c1_106, %c0_107] : memref<3x128xf32, #tpu.memory_space<vmem>>, vector<1x128xf32>
      %221 = vector.broadcast %219 : vector<1x1xf32> to vector<1x128xf32>
      %222 = arith.mulf %220, %221 : vector<1x128xf32>
      %cst_108 = arith.constant dense<0.000000e+00> : vector<1xf32>
      %223 = vector.multi_reduction <add>, %222, %cst_108 [1] : vector<1x128xf32> to vector<1xf32>
      %224 = vector.shape_cast %223 : vector<1xf32> to vector<1x1xf32>
      %cst_109 = arith.constant 1.280000e+02 : f32
      %225 = vector.broadcast %cst_109 : f32 to vector<1x1xf32>
      %226 = arith.divf %224, %225 : vector<1x1xf32>
      %227 = vector.broadcast %226 : vector<1x1xf32> to vector<1x128xf32>
      %228 = arith.subf %222, %227 : vector<1x128xf32>
      %229 = vector.broadcast %226 : vector<1x1xf32> to vector<1x128xf32>
      %230 = arith.subf %222, %229 : vector<1x128xf32>
      %231 = arith.mulf %228, %230 : vector<1x128xf32>
      %cst_110 = arith.constant dense<0.000000e+00> : vector<1xf32>
      %232 = vector.multi_reduction <add>, %231, %cst_110 [1] : vector<1x128xf32> to vector<1xf32>
      %233 = vector.shape_cast %232 : vector<1xf32> to vector<1x1xf32>
      %cst_111 = arith.constant 1.280000e+02 : f32
      %234 = vector.broadcast %cst_111 : f32 to vector<1x1xf32>
      %235 = arith.divf %233, %234 : vector<1x1xf32>
      %236 = vector.broadcast %226 : vector<1x1xf32> to vector<1x128xf32>
      %237 = arith.subf %222, %236 : vector<1x128xf32>
      %cst_112 = arith.constant 9.99999974E-6 : f32
      %238 = vector.broadcast %cst_112 : f32 to vector<1x1xf32>
      %239 = arith.addf %235, %238 : vector<1x1xf32>
      %240 = math.rsqrt %239 : vector<1x1xf32>
      %241 = vector.broadcast %240 : vector<1x1xf32> to vector<1x128xf32>
      %242 = arith.mulf %237, %241 : vector<1x128xf32>
      %c0_113 = arith.constant 0 : index
      %c0_114 = arith.constant 0 : index
      %243 = vector.load %arg7[%c0_113, %c0_114] : memref<1x128xf32, #tpu.memory_space<vmem>>, vector<1x128xf32>
      %244 = arith.mulf %242, %243 : vector<1x128xf32>
      %c0_115 = arith.constant 0 : index
      %c0_116 = arith.constant 0 : index
      %245 = vector.load %arg8[%c0_115, %c0_116] : memref<1x128xf32, #tpu.memory_space<vmem>>, vector<1x128xf32>
      %246 = arith.addf %244, %245 : vector<1x128xf32>
      %c2_117 = arith.constant 2 : index
      %c0_118 = arith.constant 0 : index
      %247 = vector.load %arg15[%c2_117, %c0_118] : memref<3x1xf32, #tpu.memory_space<vmem>>, vector<1x1xf32>
      %248 = tpu.reciprocal %247 : vector<1x1xf32> -> vector<1x1xf32>
      %c2_119 = arith.constant 2 : index
      %c0_120 = arith.constant 0 : index
      %249 = vector.load %arg16[%c2_119, %c0_120] : memref<3x128xf32, #tpu.memory_space<vmem>>, vector<1x128xf32>
      %250 = vector.broadcast %248 : vector<1x1xf32> to vector<1x128xf32>
      %251 = arith.mulf %249, %250 : vector<1x128xf32>
      %cst_121 = arith.constant dense<0.000000e+00> : vector<1xf32>
      %252 = vector.multi_reduction <add>, %251, %cst_121 [1] : vector<1x128xf32> to vector<1xf32>
      %253 = vector.shape_cast %252 : vector<1xf32> to vector<1x1xf32>
      %cst_122 = arith.constant 1.280000e+02 : f32
      %254 = vector.broadcast %cst_122 : f32 to vector<1x1xf32>
      %255 = arith.divf %253, %254 : vector<1x1xf32>
      %256 = vector.broadcast %255 : vector<1x1xf32> to vector<1x128xf32>
      %257 = arith.subf %251, %256 : vector<1x128xf32>
      %258 = vector.broadcast %255 : vector<1x1xf32> to vector<1x128xf32>
      %259 = arith.subf %251, %258 : vector<1x128xf32>
      %260 = arith.mulf %257, %259 : vector<1x128xf32>
      %cst_123 = arith.constant dense<0.000000e+00> : vector<1xf32>
      %261 = vector.multi_reduction <add>, %260, %cst_123 [1] : vector<1x128xf32> to vector<1xf32>
      %262 = vector.shape_cast %261 : vector<1xf32> to vector<1x1xf32>
      %cst_124 = arith.constant 1.280000e+02 : f32
      %263 = vector.broadcast %cst_124 : f32 to vector<1x1xf32>
      %264 = arith.divf %262, %263 : vector<1x1xf32>
      %265 = vector.broadcast %255 : vector<1x1xf32> to vector<1x128xf32>
      %266 = arith.subf %251, %265 : vector<1x128xf32>
      %cst_125 = arith.constant 9.99999974E-6 : f32
      %267 = vector.broadcast %cst_125 : f32 to vector<1x1xf32>
      %268 = arith.addf %264, %267 : vector<1x1xf32>
      %269 = math.rsqrt %268 : vector<1x1xf32>
      %270 = vector.broadcast %269 : vector<1x1xf32> to vector<1x128xf32>
      %271 = arith.mulf %266, %270 : vector<1x128xf32>
      %c0_126 = arith.constant 0 : index
      %c0_127 = arith.constant 0 : index
      %272 = vector.load %arg7[%c0_126, %c0_127] : memref<1x128xf32, #tpu.memory_space<vmem>>, vector<1x128xf32>
      %273 = arith.mulf %271, %272 : vector<1x128xf32>
      %c0_128 = arith.constant 0 : index
      %c0_129 = arith.constant 0 : index
      %274 = vector.load %arg8[%c0_128, %c0_129] : memref<1x128xf32, #tpu.memory_space<vmem>>, vector<1x128xf32>
      %275 = arith.addf %273, %274 : vector<1x128xf32>
      %276 = tpu.concatenate %246, %275 in 0 : vector<1x128xf32>, vector<1x128xf32> -> vector<2x128xf32>
      %c0_130 = arith.constant 0 : index
      %c0_131 = arith.constant 0 : index
      %277 = vector.load %arg9[%c0_130, %c0_131] : memref<2x128xf32, #tpu.memory_space<vmem>>, vector<2x128xf32>
      %278 = vector.broadcast %217 : vector<1x128xf32> to vector<2x128xf32>
      %279 = arith.mulf %278, %277 : vector<2x128xf32>
      %cst_132 = arith.constant dense<0.000000e+00> : vector<2xf32>
      %280 = vector.multi_reduction <add>, %279, %cst_132 [1] : vector<2x128xf32> to vector<2xf32>
      %281 = vector.shape_cast %280 : vector<2xf32> to vector<2x1xf32>
      %c0_133 = arith.constant 0 : index
      %c0_134 = arith.constant 0 : index
      %282 = vector.load %arg10[%c0_133, %c0_134] : memref<2x1xf32, #tpu.memory_space<vmem>>, vector<2x1xf32>
      %283 = arith.addf %281, %282 : vector<2x1xf32>
      %284 = vector.broadcast %283 : vector<2x1xf32> to vector<2x128xf32>
      %285 = arith.mulf %284, %276 : vector<2x128xf32>
      %cst_135 = arith.constant dense<0.000000e+00> : vector<128xf32>
      %286 = vector.multi_reduction <add>, %285, %cst_135 [0] : vector<2x128xf32> to vector<128xf32>
      %287 = vector.shape_cast %286 : vector<128xf32> to vector<1x128xf32>
      %288 = arith.addf %217, %287 : vector<1x128xf32>
      %cst_136 = arith.constant 5.000000e-01 : f32
      %289 = vector.broadcast %cst_136 : f32 to vector<1x128xf32>
      %290 = arith.mulf %288, %289 : vector<1x128xf32>
      %c0_137 = arith.constant 0 : index
      %c0_138 = arith.constant 0 : index
      %291 = vector.load %arg11[%c0_137, %c0_138] : memref<128x128xf32, #tpu.memory_space<vmem>>, vector<128x128xf32>
      %cst_139 = arith.constant dense<0.000000e+00> : vector<1x128xf32>
      %292 = tpu.matmul %290, %291, %cst_139 {dimension_numbers = #tpu.dot_dimension_numbers<[1], [0], [0], [1], [0, 0, 1, 1], [], []>} : vector<1x128xf32>, vector<128x128xf32>, vector<1x128xf32> -> vector<1x128xf32>
      %c0_140 = arith.constant 0 : index
      %c0_141 = arith.constant 0 : index
      %293 = vector.load %arg12[%c0_140, %c0_141] : memref<1x128xf32, #tpu.memory_space<vmem>>, vector<1x128xf32>
      %294 = arith.addf %292, %293 : vector<1x128xf32>
      %c0_142 = arith.constant 0 : index
      %c0_143 = arith.constant 0 : index
      %295 = vector.load %arg13[%c0_142, %c0_143] : memref<1x128xf32, #tpu.memory_space<vmem>>, vector<1x128xf32>
      tpu.vector_store %arg13[%c0_142, %c0_143], %294 {strides = array<i32>} : memref<1x128xf32, #tpu.memory_space<vmem>>, vector<1x128xf32>,
    } else {
    }
    return
  }
  func.func @transform_0(%arg0: i32) -> (i32, i32) {
    %c0_i32 = arith.constant 0 : i32
    %0 = arith.minsi %arg0, %c0_i32 : i32
    %c0_i32_0 = arith.constant 0 : i32
    %c0_i32_1 = arith.constant 0 : i32
    return %0, %c0_i32_0 : i32, i32
  }
  func.func @transform_1(%arg0: i32) -> (i32, i32) {
    %c0_i32 = arith.constant 0 : i32
    %0 = arith.minsi %arg0, %c0_i32 : i32
    %c0_i32_0 = arith.constant 0 : i32
    %c0_i32_1 = arith.constant 0 : i32
    return %0, %c0_i32_0 : i32, i32
  }
  func.func @transform_2(%arg0: i32) -> (i32, i32) {
    %c0_i32 = arith.constant 0 : i32
    %0 = arith.minsi %arg0, %c0_i32 : i32
    %c0_i32_0 = arith.constant 0 : i32
    %c0_i32_1 = arith.constant 0 : i32
    return %0, %c0_i32_0 : i32, i32
  }
  func.func @transform_3(%arg0: i32) -> (i32, i32) {
    %c0_i32 = arith.constant 0 : i32
    %c0_i32_0 = arith.constant 0 : i32
    %c0_i32_1 = arith.constant 0 : i32
    return %c0_i32, %c0_i32_0 : i32, i32
  }
  func.func @transform_4(%arg0: i32) -> (i32, i32) {
    %c0_i32 = arith.constant 0 : i32
    %c0_i32_0 = arith.constant 0 : i32
    %c0_i32_1 = arith.constant 0 : i32
    return %c0_i32, %c0_i32_0 : i32, i32
  }
  func.func @transform_5(%arg0: i32) -> (i32, i32) {
    %c0_i32 = arith.constant 0 : i32
    %c0_i32_0 = arith.constant 0 : i32
    %c0_i32_1 = arith.constant 0 : i32
    return %c0_i32, %c0_i32_0 : i32, i32
  }
  func.func @transform_6(%arg0: i32) -> (i32, i32) {
    %c0_i32 = arith.constant 0 : i32
    %c0_i32_0 = arith.constant 0 : i32
    %c0_i32_1 = arith.constant 0 : i32
    return %c0_i32, %c0_i32_0 : i32, i32
  }
  func.func @transform_7(%arg0: i32) -> (i32, i32) {
    %c0_i32 = arith.constant 0 : i32
    %c0_i32_0 = arith.constant 0 : i32
    %c0_i32_1 = arith.constant 0 : i32
    return %c0_i32, %c0_i32_0 : i32, i32
  }
  func.func @transform_8(%arg0: i32) -> (i32, i32) {
    %c0_i32 = arith.constant 0 : i32
    %c0_i32_0 = arith.constant 0 : i32
    %c0_i32_1 = arith.constant 0 : i32
    return %c0_i32, %c0_i32_0 : i32, i32
  }
  func.func @transform_9(%arg0: i32) -> (i32, i32) {
    %c0_i32 = arith.constant 0 : i32
    %c0_i32_0 = arith.constant 0 : i32
    %c0_i32_1 = arith.constant 0 : i32
    return %c0_i32, %c0_i32_0 : i32, i32
  }
  func.func @transform_10(%arg0: i32) -> (i32, i32) {
    %c0_i32 = arith.constant 0 : i32
    %c0_i32_0 = arith.constant 0 : i32
    %c0_i32_1 = arith.constant 0 : i32
    return %c0_i32, %c0_i32_0 : i32, i32
  }
  func.func @transform_11(%arg0: i32) -> (i32, i32) {
    %c0_i32 = arith.constant 0 : i32
    %c0_i32_0 = arith.constant 0 : i32
    %c0_i32_1 = arith.constant 0 : i32
    return %c0_i32, %c0_i32_0 : i32, i32
  }
  func.func @transform_12(%arg0: i32) -> (i32, i32) {
    %c0_i32 = arith.constant 0 : i32
    %c0_i32_0 = arith.constant 0 : i32
    %c0_i32_1 = arith.constant 0 : i32
    return %c0_i32, %c0_i32_0 : i32, i32
  }
}

</mosaic_0001>

<llo_original>
// kernel: _forward.1
$region0: #{_forward.1}
  #allocation0 [shape = 'u32[]', space=smem, size = 0x4, offset = 0x4, fixed_abs, tag = 'smem constant byte address 0x4 - core index']
  #allocation1 [shape = 'u32[72,128]{1,0:T(1,128)}', space=vmem, size = 0x9000, scoped, tag = 'internal scratch']
  #allocation2 [shape = 'f32[3,1]{1,0:T(4,128)}', space=vmem, size = 0x800, scoped, tag = 'scratch operand']
  #allocation3 [shape = 'f32[3,1]{1,0:T(4,128)}', space=vmem, size = 0x800, scoped, tag = 'scratch operand']
  #allocation4 [shape = 'f32[3,128]{1,0:T(4,128)}', space=vmem, size = 0x800, scoped, tag = 'scratch operand']
  %s0 = inlined_call_operand.hbm [shape: f32[12,128], index: 0, kind: input, shape index: {}]
  %s1 = inlined_call_operand.vmem [shape: f32[8,128], index: 1, kind: input, shape index: {}]
  %s2 = inlined_call_operand.hbm [shape: f32[10,128], index: 2, kind: input, shape index: {}]
  %s3 = inlined_call_operand.hbm [shape: f32[128,256], index: 3, kind: input, shape index: {}]
  %s4 = inlined_call_operand.vmem [shape: f32[1,256], index: 4, kind: input, shape index: {}]
  %s5 = inlined_call_operand.vmem [shape: f32[1,128], index: 5, kind: input, shape index: {}]
  %s6 = inlined_call_operand.hbm [shape: f32[1,128], index: 6, kind: input, shape index: {}]
  %s7 = inlined_call_operand.hbm [shape: f32[1,128], index: 7, kind: input, shape index: {}]
  %s8 = inlined_call_operand.hbm [shape: f32[2,128], index: 8, kind: input, shape index: {}]
  %s9 = inlined_call_operand.vmem [shape: f32[2,1], index: 9, kind: input, shape index: {}]
  %s10 = inlined_call_operand.hbm [shape: f32[128,128], index: 10, kind: input, shape index: {}]
  %s11 = inlined_call_operand.hbm [shape: f32[1,128], index: 11, kind: input, shape index: {}]
  %s12 = inlined_call_operand.hbm [shape: f32[1,128], index: 12, kind: output, shape index: {}]
  %s13 = sld [smem:[#allocation0]]
  $region98: #{_forward.1} parent=0
    _
  %s15 = ssub.s32 1, %s13
  %s16 = scalar_select 0, %s15, %s13
  $region1: #{_forward.1} parent=0
    #allocation5 [shape = 'u8[8192]{0}', space=vmem, size = 0x2000, scoped, tag = 'input window, operand 0, single buffered']
    #allocation6 [shape = 's32[1]{0}', space=sflag, size = 0x4, scoped, tag = 'scoped memory for _forward.1']
    #allocation7 [shape = 's32[1]{0}', space=sflag, size = 0x4, scoped, tag = 'scoped memory for _forward.1']
    #allocation8 [shape = 'u8[8192]{0}', space=vmem, size = 0x2000, scoped, tag = 'input window, operand 2, single buffered']
    #allocation9 [shape = 's32[1]{0}', space=sflag, size = 0x4, scoped, tag = 'scoped memory for _forward.1']
    #allocation10 [shape = 'u8[131072]{0}', space=vmem, size = 0x20000, scoped, tag = 'input window, operand 3, single buffered']
    #allocation11 [shape = 'u8[512]{0}', space=vmem, size = 0x400, scoped, tag = 'input window, operand 6, single buffered']
    #allocation12 [shape = 's32[1]{0}', space=sflag, size = 0x4, scoped, tag = 'scoped memory for _forward.1']
    #allocation13 [shape = 'u8[512]{0}', space=vmem, size = 0x400, scoped, tag = 'input window, operand 7, single buffered']
    #allocation14 [shape = 'u8[1024]{0}', space=vmem, size = 0x400, scoped, tag = 'input window, operand 8, single buffered']
    #allocation15 [shape = 's32[1]{0}', space=sflag, size = 0x4, scoped, tag = 'scoped memory for _forward.1']
    #allocation16 [shape = 'u8[65536]{0}', space=vmem, size = 0x10000, scoped, tag = 'input window, operand 10, single buffered']
    #allocation17 [shape = 'u8[512]{0}', space=vmem, size = 0x400, scoped, tag = 'input window, operand 11, single buffered']
    #allocation18 [shape = 's32[1]{0}', space=sflag, size = 0x4, scoped, tag = 'scoped memory for _forward.1']
    #allocation19 [shape = 'u8[512]{0}', space=vmem, size = 0x400, scoped, tag = 'output window, operand 0, single buffered']
    %17 = vsyncpa [#allocation6], 0
    %18 = vsyncpa [#allocation9], 0
    %19 = vsyncpa [#allocation12], 0
    %20 = vsyncpa [#allocation15], 0
    %21 = vsyncpa [#allocation18], 0
    %22 = vsyncpa [#allocation7], 0
    // Predicated region
    $region2: #{_forward.1} parent=1 // pred_check
      _
    $region3: #{_forward.1} parent=1 // pred_check_branch
      %24 = sbr.rel (0) target = $region5
    $region4: #{_forward.1} parent=1 // pred_region
      %26 = vsyncadd [#allocation6], 0
      %s27 = sshll.u32 %s0, 4
      %s28 = int_to_ptr.hbm [resolvable:$true] %s27
      %s29 = sshll.u32 [#allocation5], 4
      %s30 = int_to_ptr.vmem [resolvable:$true] %s29
      %35 = dma.hbm_to_vmem [thread:$0]  %s28, 256, %s30, [#allocation6], 128, 128, 8
    $region5: #{_forward.1} parent=1 // pred_fallthru
      _
    // Predicated region
    $region6: #{_forward.1} parent=1 // pred_check
      _
    $region7: #{_forward.1} parent=1 // pred_check_branch
      %37 = sbr.rel (0) target = $region9
    $region8: #{_forward.1} parent=1 // pred_region
      _
    $region9: #{_forward.1} parent=1 // pred_fallthru
      _
    // Predicated region
    $region10: #{_forward.1} parent=1 // pred_check
      _
    $region11: #{_forward.1} parent=1 // pred_check_branch
      %39 = sbr.rel (0) target = $region13
    $region12: #{_forward.1} parent=1 // pred_region
      %41 = vsyncadd [#allocation9], 0
      %s42 = sshll.u32 %s2, 4
      %s43 = int_to_ptr.hbm [resolvable:$true] %s42
      %s44 = sshll.u32 [#allocation8], 4
      %s45 = int_to_ptr.vmem [resolvable:$true] %s44
      %50 = dma.hbm_to_vmem [thread:$0]  %s43, 256, %s45, [#allocation9], 128, 128, 8
    $region13: #{_forward.1} parent=1 // pred_fallthru
      _
    // Predicated region
    $region14: #{_forward.1} parent=1 // pred_check
      _
    $region15: #{_forward.1} parent=1 // pred_check_branch
      %52 = sbr.rel (0) target = $region17
    $region16: #{_forward.1} parent=1 // pred_region
      %54 = vsyncadd [#allocation9], 0
      %s55 = sshll.u32 %s3, 4
      %s56 = int_to_ptr.hbm [resolvable:$true] %s55
      %s57 = sshll.u32 [#allocation10], 4
      %s58 = int_to_ptr.vmem [resolvable:$true] %s57
      %63 = dma.hbm_to_vmem [thread:$0]  %s56, 4096, %s58, [#allocation9], 256, 256, 16
    $region17: #{_forward.1} parent=1 // pred_fallthru
      _
    // Predicated region
    $region18: #{_forward.1} parent=1 // pred_check
      _
    $region19: #{_forward.1} parent=1 // pred_check_branch
      %65 = sbr.rel (0) target = $region21
    $region20: #{_forward.1} parent=1 // pred_region
      _
    $region21: #{_forward.1} parent=1 // pred_fallthru
      _
    // Predicated region
    $region22: #{_forward.1} parent=1 // pred_check
      _
    $region23: #{_forward.1} parent=1 // pred_check_branch
      %67 = sbr.rel (0) target = $region25
    $region24: #{_forward.1} parent=1 // pred_region
      _
    $region25: #{_forward.1} parent=1 // pred_fallthru
      _
    // Predicated region
    $region26: #{_forward.1} parent=1 // pred_check
      _
    $region27: #{_forward.1} parent=1 // pred_check_branch
      %69 = sbr.rel (0) target = $region29
    $region28: #{_forward.1} parent=1 // pred_region
      %71 = vsyncadd [#allocation12], 0
      %s73 = sshll.u32 %s6, 4
      %s74 = int_to_ptr.hbm [resolvable:$true] %s73
      %s75 = sshll.u32 [#allocation11], 4
      %s76 = int_to_ptr.vmem [resolvable:$true] %s75
      %78 = dma.hbm_to_vmem [thread:$0]  %s74, 16, %s76, [#allocation12]
    $region29: #{_forward.1} parent=1 // pred_fallthru
      _
    // Predicated region
    $region30: #{_forward.1} parent=1 // pred_check
      _
    $region31: #{_forward.1} parent=1 // pred_check_branch
      %80 = sbr.rel (0) target = $region33
    $region32: #{_forward.1} parent=1 // pred_region
      %82 = vsyncadd [#allocation12], 0
      %s84 = sshll.u32 %s7, 4
      %s85 = int_to_ptr.hbm [resolvable:$true] %s84
      %s86 = sshll.u32 [#allocation13], 4
      %s87 = int_to_ptr.vmem [resolvable:$true] %s86
      %89 = dma.hbm_to_vmem [thread:$0]  %s85, 16, %s87, [#allocation12]
    $region33: #{_forward.1} parent=1 // pred_fallthru
      _
    // Predicated region
    $region34: #{_forward.1} parent=1 // pred_check
      _
    $region35: #{_forward.1} parent=1 // pred_check_branch
      %91 = sbr.rel (0) target = $region37
    $region36: #{_forward.1} parent=1 // pred_region
      %93 = vsyncadd [#allocation15], 0
      %s95 = sshll.u32 %s8, 4
      %s96 = int_to_ptr.hbm [resolvable:$true] %s95
      %s97 = sshll.u32 [#allocation14], 4
      %s98 = int_to_ptr.vmem [resolvable:$true] %s97
      %100 = dma.hbm_to_vmem [thread:$0]  %s96, 32, %s98, [#allocation15]
    $region37: #{_forward.1} parent=1 // pred_fallthru
      _
    // Predicated region
    $region38: #{_forward.1} parent=1 // pred_check
      _
    $region39: #{_forward.1} parent=1 // pred_check_branch
      %102 = sbr.rel (0) target = $region41
    $region40: #{_forward.1} parent=1 // pred_region
      _
    $region41: #{_forward.1} parent=1 // pred_fallthru
      _
    // Predicated region
    $region42: #{_forward.1} parent=1 // pred_check
      _
    $region43: #{_forward.1} parent=1 // pred_check_branch
      %104 = sbr.rel (0) target = $region45
    $region44: #{_forward.1} parent=1 // pred_region
      %106 = vsyncadd [#allocation15], 0
      %s107 = sshll.u32 %s10, 4
      %s108 = int_to_ptr.hbm [resolvable:$true] %s107
      %s109 = sshll.u32 [#allocation16], 4
      %s110 = int_to_ptr.vmem [resolvable:$true] %s109
      %115 = dma.hbm_to_vmem [thread:$0]  %s108, 2048, %s110, [#allocation15], 128, 128, 8
    $region45: #{_forward.1} parent=1 // pred_fallthru
      _
    // Predicated region
    $region46: #{_forward.1} parent=1 // pred_check
      _
    $region47: #{_forward.1} parent=1 // pred_check_branch
      %117 = sbr.rel (0) target = $region49
    $region48: #{_forward.1} parent=1 // pred_region
      %119 = vsyncadd [#allocation18], 0
      %s121 = sshll.u32 %s11, 4
      %s122 = int_to_ptr.hbm [resolvable:$true] %s121
      %s123 = sshll.u32 [#allocation17], 4
      %s124 = int_to_ptr.vmem [resolvable:$true] %s123
      %126 = dma.hbm_to_vmem [thread:$0]  %s122, 16, %s124, [#allocation18]
    $region49: #{_forward.1} parent=1 // pred_fallthru
      _
    // Predicated region
    $region50: #{_forward.1} parent=1 // pred_check
      _
    $region51: #{_forward.1} parent=1 // pred_check_branch
      %128 = sbr.rel (0) target = $region53
    $region52: #{_forward.1} parent=1 // pred_region
      %130 = dma.done [#allocation6], 256
    $region53: #{_forward.1} parent=1 // pred_fallthru
      _
    // Predicated region
    $region54: #{_forward.1} parent=1 // pred_check
      _
    $region55: #{_forward.1} parent=1 // pred_check_branch
      %132 = sbr.rel (0) target = $region57
    $region56: #{_forward.1} parent=1 // pred_region
      %134 = dma.done [#allocation9], 256
    $region57: #{_forward.1} parent=1 // pred_fallthru
      _
    // Predicated region
    $region58: #{_forward.1} parent=1 // pred_check
      _
    $region59: #{_forward.1} parent=1 // pred_check_branch
      %136 = sbr.rel (0) target = $region61
    $region60: #{_forward.1} parent=1 // pred_region
      %138 = dma.done [#allocation9], 4096
    $region61: #{_forward.1} parent=1 // pred_fallthru
      _
    // Predicated region
    $region62: #{_forward.1} parent=1 // pred_check
      _
    $region63: #{_forward.1} parent=1 // pred_check_branch
      %140 = sbr.rel (0) target = $region65
    $region64: #{_forward.1} parent=1 // pred_region
      %142 = dma.done [#allocation12], 16
    $region65: #{_forward.1} parent=1 // pred_fallthru
      _
    // Predicated region
    $region66: #{_forward.1} parent=1 // pred_check
      _
    $region67: #{_forward.1} parent=1 // pred_check_branch
      %144 = sbr.rel (0) target = $region69
    $region68: #{_forward.1} parent=1 // pred_region
      %146 = dma.done [#allocation12], 16
    $region69: #{_forward.1} parent=1 // pred_fallthru
      _
    // Predicated region
    $region70: #{_forward.1} parent=1 // pred_check
      _
    $region71: #{_forward.1} parent=1 // pred_check_branch
      %148 = sbr.rel (0) target = $region73
    $region72: #{_forward.1} parent=1 // pred_region
      %150 = dma.done [#allocation15], 32
    $region73: #{_forward.1} parent=1 // pred_fallthru
      _
    // Predicated region
    $region74: #{_forward.1} parent=1 // pred_check
      _
    $region75: #{_forward.1} parent=1 // pred_check_branch
      %152 = sbr.rel (0) target = $region77
    $region76: #{_forward.1} parent=1 // pred_region
      %154 = dma.done [#allocation15], 2048
    $region77: #{_forward.1} parent=1 // pred_fallthru
      _
    // Predicated region
    $region78: #{_forward.1} parent=1 // pred_check
      _
    $region79: #{_forward.1} parent=1 // pred_check_branch
      %156 = sbr.rel (0) target = $region81
    $region80: #{_forward.1} parent=1 // pred_region
      %158 = dma.done [#allocation18], 16
    $region81: #{_forward.1} parent=1 // pred_fallthru
      _
    %p159 = scmp.eq.s32.totalorder 0, 0
    // Predicated region
    $region82: #{_forward.1} parent=1 // pred_check
      %p160 = pneg %p159
    $region83: #{_forward.1} parent=1 // pred_check_branch
      %162 = sbr.rel (%p160) target = $region85
    $region84: #{_forward.1} parent=1 // pred_region
      %vm163 = vcmask 2048
      %164 = vst.msk [vmem:[#allocation2] sm:$0x7] %vm163, -1e+30
      %165 = vst.msk [vmem:[#allocation3] sm:$0x7] %vm163, 0.0
      %166 = vst [vmem:[#allocation4] sm:$0x7] 0.0
    $region85: #{_forward.1} parent=1 // pred_fallthru
      _
    %v167 = vld [vmem:[#allocation5] sm:$0xff]
    %v168 = vld [vmem:[#allocation5 + $0x8] sm:$0xf]
    %v169 = vld [vmem:[#allocation10] sm:$0xff]
    %v170 = vld [vmem:[#allocation10 + $0x8] sm:$0xff]
    %v171 = vld [vmem:[#allocation10 + $0x10] sm:$0xff]
    %v172 = vld [vmem:[#allocation10 + $0x18] sm:$0xff]
    %v173 = vld [vmem:[#allocation10 + $0x20] sm:$0xff]
    %v174 = vld [vmem:[#allocation10 + $0x28] sm:$0xff]
    %v175 = vld [vmem:[#allocation10 + $0x30] sm:$0xff]
    %v176 = vld [vmem:[#allocation10 + $0x38] sm:$0xff]
    %v177 = vld [vmem:[#allocation10 + $0x40] sm:$0xff]
    %v178 = vld [vmem:[#allocation10 + $0x48] sm:$0xff]
    %v179 = vld [vmem:[#allocation10 + $0x50] sm:$0xff]
    %v180 = vld [vmem:[#allocation10 + $0x58] sm:$0xff]
    %v181 = vld [vmem:[#allocation10 + $0x60] sm:$0xff]
    %v182 = vld [vmem:[#allocation10 + $0x68] sm:$0xff]
    %v183 = vld [vmem:[#allocation10 + $0x70] sm:$0xff]
    %v184 = vld [vmem:[#allocation10 + $0x78] sm:$0xff]
    %v185 = vld [vmem:[#allocation10 + $0x80] sm:$0xff]
    %v186 = vld [vmem:[#allocation10 + $0x88] sm:$0xff]
    %v187 = vld [vmem:[#allocation10 + $0x90] sm:$0xff]
    %v188 = vld [vmem:[#allocation10 + $0x98] sm:$0xff]
    %v189 = vld [vmem:[#allocation10 + $0xa0] sm:$0xff]
    %v190 = vld [vmem:[#allocation10 + $0xa8] sm:$0xff]
    %v191 = vld [vmem:[#allocation10 + $0xb0] sm:$0xff]
    %v192 = vld [vmem:[#allocation10 + $0xb8] sm:$0xff]
    %v193 = vld [vmem:[#allocation10 + $0xc0] sm:$0xff]
    %v194 = vld [vmem:[#allocation10 + $0xc8] sm:$0xff]
    %v195 = vld [vmem:[#allocation10 + $0xd0] sm:$0xff]
    %v196 = vld [vmem:[#allocation10 + $0xd8] sm:$0xff]
    %v197 = vld [vmem:[#allocation10 + $0xe0] sm:$0xff]
    %v198 = vld [vmem:[#allocation10 + $0xe8] sm:$0xff]
    %v199 = vld [vmem:[#allocation10 + $0xf0] sm:$0xff]
    %v200 = vld [vmem:[#allocation10 + $0xf8] sm:$0xff]
    %v201 = vld [vmem:[%s4] sm:$0x3]
    %v203 = vperm.slane %v201, 0
    %v204 = vperm.slane %v201, 1
    %207 = vmatpush.msra.mxu0 %v199
    %208 = vmatpush.msra.mxu0 %v197
    %209 = vmatpush.msra.mxu0 %v195
    %210 = vmatpush.msra.mxu0 %v193
    %211 = vmatpush.msra.mxu0 %v191
    %212 = vmatpush.msra.mxu0 %v189
    %213 = vmatpush.msra.mxu0 %v187
    %214 = vmatpush.msra.mxu0 %v185
    %215 = vmatpush.msra.mxu0 %v183
    %216 = vmatpush.msra.mxu0 %v181
    %217 = vmatpush.msra.mxu0 %v179
    %218 = vmatpush.msra.mxu0 %v177
    %219 = vmatpush.msra.mxu0 %v175
    %220 = vmatpush.msra.mxu0 %v173
    %221 = vmatpush.msra.mxu0 %v171
    %222 = vmatpush.msra.mxu0 %v169
    %223 = vmatmul.f32.gmra.mxu0 %v167
    %v224 = vpop.f32.mrf.mxu0
    %v225 = vadd.f32 %v203, %v224
    %226 = vmatmul.f32.gmra.mxu0 %v168
    %v227 = vpop.f32.mrf.mxu0
    %v228 = vadd.f32 %v203, %v227
    %229 = vdwg.mxu0
    %230 = vmatpush.msra.mxu0 %v200
    %231 = vmatpush.msra.mxu0 %v198
    %232 = vmatpush.msra.mxu0 %v196
    %233 = vmatpush.msra.mxu0 %v194
    %234 = vmatpush.msra.mxu0 %v192
    %235 = vmatpush.msra.mxu0 %v190
    %236 = vmatpush.msra.mxu0 %v188
    %237 = vmatpush.msra.mxu0 %v186
    %238 = vmatpush.msra.mxu0 %v184
    %239 = vmatpush.msra.mxu0 %v182
    %240 = vmatpush.msra.mxu0 %v180
    %241 = vmatpush.msra.mxu0 %v178
    %242 = vmatpush.msra.mxu0 %v176
    %243 = vmatpush.msra.mxu0 %v174
    %244 = vmatpush.msra.mxu0 %v172
    %245 = vmatpush.msra.mxu0 %v170
    %246 = vmatmul.f32.gmra.mxu0 %v167
    %v247 = vpop.f32.mrf.mxu0
    %v248 = vadd.f32 %v204, %v247
    %249 = vmatmul.f32.gmra.mxu0 %v168
    %v250 = vpop.f32.mrf.mxu0
    %v251 = vadd.f32 %v204, %v250
    %252 = vdwg.mxu0
    %v253 = vtanh.pop %v225
    %v254 = vtanh.pop %v228
    %v255 = vxor.u32 %v248, 2147483648
    %v256 = vxor.u32 %v251, 2147483648
    %v257 = vmul.f32 %v255, 1.442695
    %v258 = vpow.pop %v257
    %v259 = vmul.f32 %v256, 1.442695
    %v260 = vpow.pop %v259
    %v261 = vadd.f32 %v258, 1.0
    %v262 = vadd.f32 %v260, 1.0
    %v263 = vrcp.pop %v261
    %v264 = vmul.f32 %v261, %v263
    %v265 = vsub.f32 1.0, %v264
    %v266 = vmul.f32 %v263, %v265
    %v267 = vadd.f32 %v263, %v266
    %vm268 = vweird.f32 %v261
    %vm269 = vweird.f32 %v263
    %vm270 = vmor %vm268, %vm269
    %v271 = vsel %vm270, %v263, %v267
    %v272 = vand.u32 2147483647, %v261
    %vm273 = vcmp.eq.f32.partialorder %v272, 8.507059e+37
    %v274 = vand.u32 %v261, 2147483648
    %v275 = vor.u32 1.1754944e-38, %v274
    %v276 = vsel %vm273, %v275, %v271
    %v277 = vmul.f32 1.0, %v276
    %v278 = vrcp.pop %v262
    %v279 = vmul.f32 %v262, %v278
    %v280 = vsub.f32 1.0, %v279
    %v281 = vmul.f32 %v278, %v280
    %v282 = vadd.f32 %v278, %v281
    %vm283 = vweird.f32 %v262
    %vm284 = vweird.f32 %v278
    %vm285 = vmor %vm283, %vm284
    %v286 = vsel %vm285, %v278, %v282
    %v287 = vand.u32 2147483647, %v262
    %vm288 = vcmp.eq.f32.partialorder %v287, 8.507059e+37
    %v289 = vand.u32 %v262, 2147483648
    %v290 = vor.u32 1.1754944e-38, %v289
    %v291 = vsel %vm288, %v290, %v286
    %v292 = vmul.f32 1.0, %v291
    %v293 = vmul.f32 %v253, %v277
    %v294 = vmul.f32 %v254, %v292
    %v295 = vld [vmem:[%s5] sm:$0x1]
    %v297 = vperm.slane %v295, 0
    %v299 = vmul.f32 %v293, %v297
    %v300 = vmul.f32 %v294, %v297
    %301 = vadd.xlane.f32.xlu0 %v299
    %v302 = vpop.xlane.xlu0 %301
    %vm303 = vcmask 1043456
    %v304 = vsel %vm303, %v300, 0.0
    %305 = vadd.xlane.f32.xlu0 %v304
    %v306 = vpop.xlane.xlu0 %305
    %s307 = smul.u32 0, 12
    %v308 = vlaneseq
    %v309 = vshrl.u32 %v308, 7
    %v310 = vadd.s32 %v309, 8
    %v311 = vstv %s307
    %v312 = vadd.s32 %v311, %v309
    %v313 = vadd.s32 %v311, %v310
    %vm314 = vcmp.lt.s32.totalorder %v312, 12
    %vm315 = vcmp.lt.s32.totalorder %v313, 12
    %p316 = scmp.lt.s32.totalorder 0, 1
    %s317 = scalar_select %p316, 1, 0
    %v318 = vstv %s317
    %vm319 = vcmp.eq.s32.totalorder %v318, 1
    %vm320 = vmand %vm314, %vm319
    %vm321 = vmand %vm315, %vm319
    %v322 = vsel %vm320, %v302, -1e+30
    %v323 = vsel %vm321, %v306, -1e+30
    %v324 = vld [vmem:[#allocation2] sm:$0x1]
    %v325 = vsel %vm303, %v323, -inf
    %v326 = vmax.f32 %v322, %v325
    %v327 = vrot.slane %v326, 4
    %v328 = vmax.f32 %v326, %v327
    %v329 = vrot.slane %v328, 2
    %v330 = vmax.f32 %v328, %v329
    %v331 = vrot.slane %v330, 1
    %v332 = vmax.f32 %v330, %v331
    %v333 = vmax.f32 %v324, %v332
    %v334 = vsub.f32 %v324, %v333
    %v335 = vmul.f32 %v334, 1.442695
    %v336 = vpow.pop %v335
    %v337 = vperm.slane %v333, 0
    %v338 = vsub.f32 %v322, %v337
    %v339 = vsub.f32 %v323, %v337
    %v340 = vmul.f32 %v338, 1.442695
    %v341 = vpow.pop %v340
    %v342 = vmul.f32 %v339, 1.442695
    %v343 = vpow.pop %v342
    %v344 = vsel %vm320, 1, 0
    %v345 = vsel %vm321, 1, 0
    %vm346 = vcmp.eq.s32.totalorder %v344, 1
    %vm347 = vcmp.eq.s32.totalorder %v345, 1
    %v348 = vsel %vm346, %v167, 0.0
    %v349 = vsel %vm347, %v168, 0.0
    %v350 = vld [vmem:[#allocation3] sm:$0x1]
    %v351 = vmul.f32 %v336, %v350
    %vm352 = vcmask 7168
    %v353 = vsel %vm352, %v341, 0.0
    %vm354 = vcmask 3072
    %v355 = vsel %vm354, %v343, 0.0
    %v356 = vadd.f32 %v353, %v355
    %v357 = vrot.slane %v356, 4
    %v358 = vadd.f32 %v356, %v357
    %v359 = vrot.slane %v358, 2
    %v360 = vadd.f32 %v358, %v359
    %v361 = vrot.slane %v360, 1
    %v362 = vadd.f32 %v360, %v361
    %v363 = vadd.f32 %v351, %v362
    %vm364 = vcmask 0
    %365 = vst.msk [vmem:[#allocation3] sm:$0x1] %vm364, %v363
    %v366 = vld [vmem:[#allocation4] sm:$0x1]
    %368 = vset.pattern.permute.xlu0 0
    %369 = vperm.xlu0 %368, %v336
    %v370 = vpop.permute.xlu0 %369
    %v372 = vmul.f32 %v370, %v366
    %374 = vset.pattern.permute.xlu0 0
    %375 = vperm.xlu0 %374, %v341
    %v376 = vpop.permute.xlu0 %375
    %379 = vset.pattern.permute.xlu0 0
    %380 = vperm.xlu0 %379, %v343
    %v381 = vpop.permute.xlu0 %380
    %v383 = vmul.f32 %v376, %v348
    %v384 = vmul.f32 %v381, %v349
    %v385 = vsel %vm303, %v384, 0.0
    %v386 = vadd.f32 %v383, %v385
    %v387 = vrot.slane %v386, 4
    %v388 = vadd.f32 %v386, %v387
    %v389 = vrot.slane %v388, 2
    %v390 = vadd.f32 %v388, %v389
    %v391 = vrot.slane %v390, 1
    %v392 = vadd.f32 %v390, %v391
    %v393 = vadd.f32 %v372, %v392
    %394 = vst [vmem:[#allocation4] sm:$0x1] %v393
    %395 = vst.msk [vmem:[#allocation2] sm:$0x1] %vm364, %v333
    %v396 = vld [vmem:[%s1] sm:$0xff]
    %v397 = vld [vmem:[#allocation10] sm:$0xff]
    %v398 = vld [vmem:[#allocation10 + $0x8] sm:$0xff]
    %v399 = vld [vmem:[#allocation10 + $0x10] sm:$0xff]
    %v400 = vld [vmem:[#allocation10 + $0x18] sm:$0xff]
    %v401 = vld [vmem:[#allocation10 + $0x20] sm:$0xff]
    %v402 = vld [vmem:[#allocation10 + $0x28] sm:$0xff]
    %v403 = vld [vmem:[#allocation10 + $0x30] sm:$0xff]
    %v404 = vld [vmem:[#allocation10 + $0x38] sm:$0xff]
    %v405 = vld [vmem:[#allocation10 + $0x40] sm:$0xff]
    %v406 = vld [vmem:[#allocation10 + $0x48] sm:$0xff]
    %v407 = vld [vmem:[#allocation10 + $0x50] sm:$0xff]
    %v408 = vld [vmem:[#allocation10 + $0x58] sm:$0xff]
    %v409 = vld [vmem:[#allocation10 + $0x60] sm:$0xff]
    %v410 = vld [vmem:[#allocation10 + $0x68] sm:$0xff]
    %v411 = vld [vmem:[#allocation10 + $0x70] sm:$0xff]
    %v412 = vld [vmem:[#allocation10 + $0x78] sm:$0xff]
    %v413 = vld [vmem:[#allocation10 + $0x80] sm:$0xff]
    %v414 = vld [vmem:[#allocation10 + $0x88] sm:$0xff]
    %v415 = vld [vmem:[#allocation10 + $0x90] sm:$0xff]
    %v416 = vld [vmem:[#allocation10 + $0x98] sm:$0xff]
    %v417 = vld [vmem:[#allocation10 + $0xa0] sm:$0xff]
    %v418 = vld [vmem:[#allocation10 + $0xa8] sm:$0xff]
    %v419 = vld [vmem:[#allocation10 + $0xb0] sm:$0xff]
    %v420 = vld [vmem:[#allocation10 + $0xb8] sm:$0xff]
    %v421 = vld [vmem:[#allocation10 + $0xc0] sm:$0xff]
    %v422 = vld [vmem:[#allocation10 + $0xc8] sm:$0xff]
    %v423 = vld [vmem:[#allocation10 + $0xd0] sm:$0xff]
    %v424 = vld [vmem:[#allocation10 + $0xd8] sm:$0xff]
    %v425 = vld [vmem:[#allocation10 + $0xe0] sm:$0xff]
    %v426 = vld [vmem:[#allocation10 + $0xe8] sm:$0xff]
    %v427 = vld [vmem:[#allocation10 + $0xf0] sm:$0xff]
    %v428 = vld [vmem:[#allocation10 + $0xf8] sm:$0xff]
    %v429 = vld [vmem:[%s4] sm:$0x3]
    %v431 = vperm.slane %v429, 0
    %v432 = vperm.slane %v429, 1
    %435 = vmatpush.msra.mxu0 %v427
    %436 = vmatpush.msra.mxu0 %v425
    %437 = vmatpush.msra.mxu0 %v423
    %438 = vmatpush.msra.mxu0 %v421
    %439 = vmatpush.msra.mxu0 %v419
    %440 = vmatpush.msra.mxu0 %v417
    %441 = vmatpush.msra.mxu0 %v415
    %442 = vmatpush.msra.mxu0 %v413
    %443 = vmatpush.msra.mxu0 %v411
    %444 = vmatpush.msra.mxu0 %v409
    %445 = vmatpush.msra.mxu0 %v407
    %446 = vmatpush.msra.mxu0 %v405
    %447 = vmatpush.msra.mxu0 %v403
    %448 = vmatpush.msra.mxu0 %v401
    %449 = vmatpush.msra.mxu0 %v399
    %450 = vmatpush.msra.mxu0 %v397
    %451 = vmatmul.f32.gmra.mxu0 %v396
    %v452 = vpop.f32.mrf.mxu0
    %v453 = vadd.f32 %v431, %v452
    %454 = vdwg.mxu0
    %455 = vmatpush.msra.mxu0 %v428
    %456 = vmatpush.msra.mxu0 %v426
    %457 = vmatpush.msra.mxu0 %v424
    %458 = vmatpush.msra.mxu0 %v422
    %459 = vmatpush.msra.mxu0 %v420
    %460 = vmatpush.msra.mxu0 %v418
    %461 = vmatpush.msra.mxu0 %v416
    %462 = vmatpush.msra.mxu0 %v414
    %463 = vmatpush.msra.mxu0 %v412
    %464 = vmatpush.msra.mxu0 %v410
    %465 = vmatpush.msra.mxu0 %v408
    %466 = vmatpush.msra.mxu0 %v406
    %467 = vmatpush.msra.mxu0 %v404
    %468 = vmatpush.msra.mxu0 %v402
    %469 = vmatpush.msra.mxu0 %v400
    %470 = vmatpush.msra.mxu0 %v398
    %471 = vmatmul.f32.gmra.mxu0 %v396
    %v472 = vpop.f32.mrf.mxu0
    %v473 = vadd.f32 %v432, %v472
    %474 = vdwg.mxu0
    %v475 = vtanh.pop %v453
    %v476 = vxor.u32 %v473, 2147483648
    %v477 = vmul.f32 %v476, 1.442695
    %v478 = vpow.pop %v477
    %v479 = vadd.f32 %v478, 1.0
    %v480 = vrcp.pop %v479
    %v481 = vmul.f32 %v479, %v480
    %v482 = vsub.f32 1.0, %v481
    %v483 = vmul.f32 %v480, %v482
    %v484 = vadd.f32 %v480, %v483
    %vm485 = vweird.f32 %v479
    %vm486 = vweird.f32 %v480
    %vm487 = vmor %vm485, %vm486
    %v488 = vsel %vm487, %v480, %v484
    %v489 = vand.u32 2147483647, %v479
    %vm490 = vcmp.eq.f32.partialorder %v489, 8.507059e+37
    %v491 = vand.u32 %v479, 2147483648
    %v492 = vor.u32 1.1754944e-38, %v491
    %v493 = vsel %vm490, %v492, %v488
    %v494 = vmul.f32 1.0, %v493
    %v495 = vmul.f32 %v475, %v494
    %v496 = vld [vmem:[%s5] sm:$0x1]
    %v498 = vperm.slane %v496, 0
    %v500 = vmul.f32 %v495, %v498
    %501 = vadd.xlane.f32.xlu0 %v500
    %v502 = vpop.xlane.xlu0 %501
    %s503 = smul.u32 0, 8
    %v504 = vstv %s503
    %v505 = vadd.s32 %v504, %v309
    %vm506 = vcmp.lt.s32.totalorder %v505, 8
    %vm507 = vmand %vm506, %vm319
    %v508 = vsel %vm507, %v502, -1e+30
    %v509 = vld [vmem:[#allocation2 + $0x1] sm:$0x1]
    %v510 = vrot.slane %v508, 4
    %v511 = vmax.f32 %v508, %v510
    %v512 = vrot.slane %v511, 2
    %v513 = vmax.f32 %v511, %v512
    %v514 = vrot.slane %v513, 1
    %v515 = vmax.f32 %v513, %v514
    %v516 = vmax.f32 %v509, %v515
    %v517 = vsub.f32 %v509, %v516
    %v518 = vmul.f32 %v517, 1.442695
    %v519 = vpow.pop %v518
    %v520 = vperm.slane %v516, 0
    %v521 = vsub.f32 %v508, %v520
    %v522 = vmul.f32 %v521, 1.442695
    %v523 = vpow.pop %v522
    %v524 = vsel %vm507, 1, 0
    %vm525 = vcmp.eq.s32.totalorder %v524, 1
    %v526 = vsel %vm525, %v396, 0.0
    %v527 = vld [vmem:[#allocation3 + $0x1] sm:$0x1]
    %v528 = vmul.f32 %v519, %v527
    %v529 = vsel %vm352, %v523, 0.0
    %v530 = vrot.slane %v529, 4
    %v531 = vadd.f32 %v529, %v530
    %v532 = vrot.slane %v531, 2
    %v533 = vadd.f32 %v531, %v532
    %v534 = vrot.slane %v533, 1
    %v535 = vadd.f32 %v533, %v534
    %v536 = vadd.f32 %v528, %v535
    %537 = vst.msk [vmem:[#allocation3 + $0x1] sm:$0x1] %vm364, %v536
    %v538 = vld [vmem:[#allocation4 + $0x1] sm:$0x1]
    %540 = vset.pattern.permute.xlu0 0
    %541 = vperm.xlu0 %540, %v519
    %v542 = vpop.permute.xlu0 %541
    %v544 = vmul.f32 %v542, %v538
    %546 = vset.pattern.permute.xlu0 0
    %547 = vperm.xlu0 %546, %v523
    %v548 = vpop.permute.xlu0 %547
    %v550 = vmul.f32 %v548, %v526
    %v551 = vrot.slane %v550, 4
    %v552 = vadd.f32 %v550, %v551
    %v553 = vrot.slane %v552, 2
    %v554 = vadd.f32 %v552, %v553
    %v555 = vrot.slane %v554, 1
    %v556 = vadd.f32 %v554, %v555
    %v557 = vadd.f32 %v544, %v556
    %558 = vst [vmem:[#allocation4 + $0x1] sm:$0x1] %v557
    %559 = vst.msk [vmem:[#allocation2 + $0x1] sm:$0x1] %vm364, %v516
    %v560 = vld [vmem:[#allocation8] sm:$0xff]
    %v561 = vld [vmem:[#allocation8 + $0x8] sm:$0x3]
    %v562 = vld [vmem:[#allocation10] sm:$0xff]
    %v563 = vld [vmem:[#allocation10 + $0x8] sm:$0xff]
    %v564 = vld [vmem:[#allocation10 + $0x10] sm:$0xff]
    %v565 = vld [vmem:[#allocation10 + $0x18] sm:$0xff]
    %v566 = vld [vmem:[#allocation10 + $0x20] sm:$0xff]
    %v567 = vld [vmem:[#allocation10 + $0x28] sm:$0xff]
    %v568 = vld [vmem:[#allocation10 + $0x30] sm:$0xff]
    %v569 = vld [vmem:[#allocation10 + $0x38] sm:$0xff]
    %v570 = vld [vmem:[#allocation10 + $0x40] sm:$0xff]
    %v571 = vld [vmem:[#allocation10 + $0x48] sm:$0xff]
    %v572 = vld [vmem:[#allocation10 + $0x50] sm:$0xff]
    %v573 = vld [vmem:[#allocation10 + $0x58] sm:$0xff]
    %v574 = vld [vmem:[#allocation10 + $0x60] sm:$0xff]
    %v575 = vld [vmem:[#allocation10 + $0x68] sm:$0xff]
    %v576 = vld [vmem:[#allocation10 + $0x70] sm:$0xff]
    %v577 = vld [vmem:[#allocation10 + $0x78] sm:$0xff]
    %v578 = vld [vmem:[#allocation10 + $0x80] sm:$0xff]
    %v579 = vld [vmem:[#allocation10 + $0x88] sm:$0xff]
    %v580 = vld [vmem:[#allocation10 + $0x90] sm:$0xff]
    %v581 = vld [vmem:[#allocation10 + $0x98] sm:$0xff]
    %v582 = vld [vmem:[#allocation10 + $0xa0] sm:$0xff]
    %v583 = vld [vmem:[#allocation10 + $0xa8] sm:$0xff]
    %v584 = vld [vmem:[#allocation10 + $0xb0] sm:$0xff]
    %v585 = vld [vmem:[#allocation10 + $0xb8] sm:$0xff]
    %v586 = vld [vmem:[#allocation10 + $0xc0] sm:$0xff]
    %v587 = vld [vmem:[#allocation10 + $0xc8] sm:$0xff]
    %v588 = vld [vmem:[#allocation10 + $0xd0] sm:$0xff]
    %v589 = vld [vmem:[#allocation10 + $0xd8] sm:$0xff]
    %v590 = vld [vmem:[#allocation10 + $0xe0] sm:$0xff]
    %v591 = vld [vmem:[#allocation10 + $0xe8] sm:$0xff]
    %v592 = vld [vmem:[#allocation10 + $0xf0] sm:$0xff]
    %v593 = vld [vmem:[#allocation10 + $0xf8] sm:$0xff]
    %v594 = vld [vmem:[%s4] sm:$0x3]
    %v596 = vperm.slane %v594, 0
    %v597 = vperm.slane %v594, 1
    %600 = vmatpush.msra.mxu0 %v592
    %601 = vmatpush.msra.mxu0 %v590
    %602 = vmatpush.msra.mxu0 %v588
    %603 = vmatpush.msra.mxu0 %v586
    %604 = vmatpush.msra.mxu0 %v584
    %605 = vmatpush.msra.mxu0 %v582
    %606 = vmatpush.msra.mxu0 %v580
    %607 = vmatpush.msra.mxu0 %v578
    %608 = vmatpush.msra.mxu0 %v576
    %609 = vmatpush.msra.mxu0 %v574
    %610 = vmatpush.msra.mxu0 %v572
    %611 = vmatpush.msra.mxu0 %v570
    %612 = vmatpush.msra.mxu0 %v568
    %613 = vmatpush.msra.mxu0 %v566
    %614 = vmatpush.msra.mxu0 %v564
    %615 = vmatpush.msra.mxu0 %v562
    %616 = vmatmul.f32.gmra.mxu0 %v560
    %v617 = vpop.f32.mrf.mxu0
    %v618 = vadd.f32 %v596, %v617
    %619 = vmatmul.f32.gmra.mxu0 %v561
    %v620 = vpop.f32.mrf.mxu0
    %v621 = vadd.f32 %v596, %v620
    %622 = vdwg.mxu0
    %623 = vmatpush.msra.mxu0 %v593
    %624 = vmatpush.msra.mxu0 %v591
    %625 = vmatpush.msra.mxu0 %v589
    %626 = vmatpush.msra.mxu0 %v587
    %627 = vmatpush.msra.mxu0 %v585
    %628 = vmatpush.msra.mxu0 %v583
    %629 = vmatpush.msra.mxu0 %v581
    %630 = vmatpush.msra.mxu0 %v579
    %631 = vmatpush.msra.mxu0 %v577
    %632 = vmatpush.msra.mxu0 %v575
    %633 = vmatpush.msra.mxu0 %v573
    %634 = vmatpush.msra.mxu0 %v571
    %635 = vmatpush.msra.mxu0 %v569
    %636 = vmatpush.msra.mxu0 %v567
    %637 = vmatpush.msra.mxu0 %v565
    %638 = vmatpush.msra.mxu0 %v563
    %639 = vmatmul.f32.gmra.mxu0 %v560
    %v640 = vpop.f32.mrf.mxu0
    %v641 = vadd.f32 %v597, %v640
    %642 = vmatmul.f32.gmra.mxu0 %v561
    %v643 = vpop.f32.mrf.mxu0
    %v644 = vadd.f32 %v597, %v643
    %645 = vdwg.mxu0
    %v646 = vtanh.pop %v618
    %v647 = vtanh.pop %v621
    %v648 = vxor.u32 %v641, 2147483648
    %v649 = vxor.u32 %v644, 2147483648
    %v650 = vmul.f32 %v648, 1.442695
    %v651 = vpow.pop %v650
    %v652 = vmul.f32 %v649, 1.442695
    %v653 = vpow.pop %v652
    %v654 = vadd.f32 %v651, 1.0
    %v655 = vadd.f32 %v653, 1.0
    %v656 = vrcp.pop %v654
    %v657 = vmul.f32 %v654, %v656
    %v658 = vsub.f32 1.0, %v657
    %v659 = vmul.f32 %v656, %v658
    %v660 = vadd.f32 %v656, %v659
    %vm661 = vweird.f32 %v654
    %vm662 = vweird.f32 %v656
    %vm663 = vmor %vm661, %vm662
    %v664 = vsel %vm663, %v656, %v660
    %v665 = vand.u32 2147483647, %v654
    %vm666 = vcmp.eq.f32.partialorder %v665, 8.507059e+37
    %v667 = vand.u32 %v654, 2147483648
    %v668 = vor.u32 1.1754944e-38, %v667
    %v669 = vsel %vm666, %v668, %v664
    %v670 = vmul.f32 1.0, %v669
    %v671 = vrcp.pop %v655
    %v672 = vmul.f32 %v655, %v671
    %v673 = vsub.f32 1.0, %v672
    %v674 = vmul.f32 %v671, %v673
    %v675 = vadd.f32 %v671, %v674
    %vm676 = vweird.f32 %v655
    %vm677 = vweird.f32 %v671
    %vm678 = vmor %vm676, %vm677
    %v679 = vsel %vm678, %v671, %v675
    %v680 = vand.u32 2147483647, %v655
    %vm681 = vcmp.eq.f32.partialorder %v680, 8.507059e+37
    %v682 = vand.u32 %v655, 2147483648
    %v683 = vor.u32 1.1754944e-38, %v682
    %v684 = vsel %vm681, %v683, %v679
    %v685 = vmul.f32 1.0, %v684
    %v686 = vmul.f32 %v646, %v670
    %v687 = vmul.f32 %v647, %v685
    %v688 = vld [vmem:[%s5] sm:$0x1]
    %v690 = vperm.slane %v688, 0
    %v692 = vmul.f32 %v686, %v690
    %v693 = vmul.f32 %v687, %v690
    %694 = vadd.xlane.f32.xlu0 %v692
    %v695 = vpop.xlane.xlu0 %694
    %vm696 = vcmask 1041408
    %v697 = vsel %vm696, %v693, 0.0
    %698 = vadd.xlane.f32.xlu0 %v697
    %v699 = vpop.xlane.xlu0 %698
    %s700 = smul.u32 0, 10
    %v701 = vstv %s700
    %v702 = vadd.s32 %v701, %v309
    %v703 = vadd.s32 %v701, %v310
    %vm704 = vcmp.lt.s32.totalorder %v702, 10
    %vm705 = vcmp.lt.s32.totalorder %v703, 10
    %vm706 = vmand %vm704, %vm319
    %vm707 = vmand %vm705, %vm319
    %v708 = vsel %vm706, %v695, -1e+30
    %v709 = vsel %vm707, %v699, -1e+30
    %v710 = vld [vmem:[#allocation2 + $0x2] sm:$0x1]
    %v711 = vsel %vm696, %v709, -inf
    %v712 = vmax.f32 %v708, %v711
    %v713 = vrot.slane %v712, 4
    %v714 = vmax.f32 %v712, %v713
    %v715 = vrot.slane %v714, 2
    %v716 = vmax.f32 %v714, %v715
    %v717 = vrot.slane %v716, 1
    %v718 = vmax.f32 %v716, %v717
    %v719 = vmax.f32 %v710, %v718
    %v720 = vsub.f32 %v710, %v719
    %v721 = vmul.f32 %v720, 1.442695
    %v722 = vpow.pop %v721
    %v723 = vperm.slane %v719, 0
    %v724 = vsub.f32 %v708, %v723
    %v725 = vsub.f32 %v709, %v723
    %v726 = vmul.f32 %v724, 1.442695
    %v727 = vpow.pop %v726
    %v728 = vmul.f32 %v725, 1.442695
    %v729 = vpow.pop %v728
    %v730 = vsel %vm706, 1, 0
    %v731 = vsel %vm707, 1, 0
    %vm732 = vcmp.eq.s32.totalorder %v730, 1
    %vm733 = vcmp.eq.s32.totalorder %v731, 1
    %v734 = vsel %vm732, %v560, 0.0
    %v735 = vsel %vm733, %v561, 0.0
    %v736 = vld [vmem:[#allocation3 + $0x2] sm:$0x1]
    %v737 = vmul.f32 %v722, %v736
    %v738 = vsel %vm352, %v727, 0.0
    %vm739 = vcmask 1024
    %v740 = vsel %vm739, %v729, 0.0
    %v741 = vadd.f32 %v738, %v740
    %v742 = vrot.slane %v741, 4
    %v743 = vadd.f32 %v741, %v742
    %v744 = vrot.slane %v743, 2
    %v745 = vadd.f32 %v743, %v744
    %v746 = vrot.slane %v745, 1
    %v747 = vadd.f32 %v745, %v746
    %v748 = vadd.f32 %v737, %v747
    %749 = vst.msk [vmem:[#allocation3 + $0x2] sm:$0x1] %vm364, %v748
    %v750 = vld [vmem:[#allocation4 + $0x2] sm:$0x1]
    %752 = vset.pattern.permute.xlu0 0
    %753 = vperm.xlu0 %752, %v722
    %v754 = vpop.permute.xlu0 %753
    %v756 = vmul.f32 %v754, %v750
    %758 = vset.pattern.permute.xlu0 0
    %759 = vperm.xlu0 %758, %v727
    %v760 = vpop.permute.xlu0 %759
    %763 = vset.pattern.permute.xlu0 0
    %764 = vperm.xlu0 %763, %v729
    %v765 = vpop.permute.xlu0 %764
    %v767 = vmul.f32 %v760, %v734
    %v768 = vmul.f32 %v765, %v735
    %v769 = vsel %vm696, %v768, 0.0
    %v770 = vadd.f32 %v767, %v769
    %v771 = vrot.slane %v770, 4
    %v772 = vadd.f32 %v770, %v771
    %v773 = vrot.slane %v772, 2
    %v774 = vadd.f32 %v772, %v773
    %v775 = vrot.slane %v774, 1
    %v776 = vadd.f32 %v774, %v775
    %v777 = vadd.f32 %v756, %v776
    %778 = vst [vmem:[#allocation4 + $0x2] sm:$0x1] %v777
    %779 = vst.msk [vmem:[#allocation2 + $0x2] sm:$0x1] %vm364, %v719
    // Predicated region
    $region86: #{_forward.1} parent=1 // pred_check
      %p780 = pneg %p159
    $region87: #{_forward.1} parent=1 // pred_check_branch
      %782 = sbr.rel (%p780) target = $region89
    $region88: #{_forward.1} parent=1 // pred_region
      %v783 = vld [vmem:[#allocation3] sm:$0x1]
      %v784 = vrcp.pop %v783
      %v785 = vmul.f32 %v783, %v784
      %v786 = vsub.f32 1.0, %v785
      %v787 = vmul.f32 %v784, %v786
      %v788 = vadd.f32 %v784, %v787
      %vm789 = vweird.f32 %v783
      %vm790 = vweird.f32 %v784
      %vm791 = vmor %vm789, %vm790
      %v792 = vsel %vm791, %v784, %v788
      %v793 = vand.u32 2147483647, %v783
      %vm794 = vcmp.eq.f32.partialorder %v793, 8.507059e+37
      %v795 = vand.u32 %v783, 2147483648
      %v796 = vor.u32 1.1754944e-38, %v795
      %v797 = vsel %vm794, %v796, %v792
      %v798 = vld [vmem:[#allocation4] sm:$0x1]
      %800 = vset.pattern.permute.xlu0 0
      %801 = vperm.xlu0 %800, %v797
      %v802 = vpop.permute.xlu0 %801
      %v804 = vmul.f32 %v798, %v802
      %vm805 = vcmask 1040384
      %v806 = vsel %vm805, %v804, 0.0
      %807 = vadd.xlane.f32.xlu0 %v806
      %v808 = vpop.xlane.xlu0 %807
      %v809 = vrcp.pop 128.0
      %v810 = vmul.f32 128.0, %v809
      %v811 = vsub.f32 1.0, %v810
      %v812 = vmul.f32 %v809, %v811
      %v813 = vadd.f32 %v809, %v812
      %vm814 = vweird.f32 %v809
      %v815 = vsel %vm814, %v809, %v813
      %v816 = vmul.f32 %v808, %v815
      %v817 = vsub.f32 %v804, %v816
      %v818 = vmul.f32 %v817, %v817
      %v819 = vsel %vm805, %v818, 0.0
      %820 = vadd.xlane.f32.xlu0 %v819
      %v821 = vpop.xlane.xlu0 %820
      %v822 = vmul.f32 %v821, %v815
      %v823 = vadd.f32 %v822, 1e-05
      %v824 = vrsqrt.pop %v823
      %v825 = vmul.f32 %v824, %v823
      %v826 = vmul.f32 %v825, %v824
      %v827 = vmul.f32 0.5, %v826
      %v828 = vsub.f32 1.5, %v827
      %v829 = vmul.f32 %v824, %v828
      %vm830 = vweird.f32 %v823
      %vm831 = vweird.f32 %v824
      %vm832 = vmor %vm830, %vm831
      %v833 = vsel %vm832, %v824, %v829
      %v834 = vmul.f32 %v817, %v833
      %v835 = vld [vmem:[#allocation11] sm:$0x1]
      %v836 = vmul.f32 %v834, %v835
      %v837 = vld [vmem:[#allocation13] sm:$0x1]
      %v838 = vadd.f32 %v836, %v837
      %v839 = vld [vmem:[#allocation3 + $0x1] sm:$0x1]
      %v840 = vrcp.pop %v839
      %v841 = vmul.f32 %v839, %v840
      %v842 = vsub.f32 1.0, %v841
      %v843 = vmul.f32 %v840, %v842
      %v844 = vadd.f32 %v840, %v843
      %vm845 = vweird.f32 %v839
      %vm846 = vweird.f32 %v840
      %vm847 = vmor %vm845, %vm846
      %v848 = vsel %vm847, %v840, %v844
      %v849 = vand.u32 2147483647, %v839
      %vm850 = vcmp.eq.f32.partialorder %v849, 8.507059e+37
      %v851 = vand.u32 %v839, 2147483648
      %v852 = vor.u32 1.1754944e-38, %v851
      %v853 = vsel %vm850, %v852, %v848
      %v854 = vld [vmem:[#allocation4 + $0x1] sm:$0x1]
      %856 = vset.pattern.permute.xlu0 0
      %857 = vperm.xlu0 %856, %v853
      %v858 = vpop.permute.xlu0 %857
      %v860 = vmul.f32 %v854, %v858
      %v861 = vsel %vm805, %v860, 0.0
      %862 = vadd.xlane.f32.xlu0 %v861
      %v863 = vpop.xlane.xlu0 %862
      %v864 = vmul.f32 %v863, %v815
      %v865 = vsub.f32 %v860, %v864
      %v866 = vmul.f32 %v865, %v865
      %v867 = vsel %vm805, %v866, 0.0
      %868 = vadd.xlane.f32.xlu0 %v867
      %v869 = vpop.xlane.xlu0 %868
      %v870 = vmul.f32 %v869, %v815
      %v871 = vadd.f32 %v870, 1e-05
      %v872 = vrsqrt.pop %v871
      %v873 = vmul.f32 %v872, %v871
      %v874 = vmul.f32 %v873, %v872
      %v875 = vmul.f32 0.5, %v874
      %v876 = vsub.f32 1.5, %v875
      %v877 = vmul.f32 %v872, %v876
      %vm878 = vweird.f32 %v871
      %vm879 = vweird.f32 %v872
      %vm880 = vmor %vm878, %vm879
      %v881 = vsel %vm880, %v872, %v877
      %v882 = vmul.f32 %v865, %v881
      %v883 = vmul.f32 %v882, %v835
      %v884 = vadd.f32 %v883, %v837
      %v885 = vld [vmem:[#allocation3 + $0x2] sm:$0x1]
      %v886 = vrcp.pop %v885
      %v887 = vmul.f32 %v885, %v886
      %v888 = vsub.f32 1.0, %v887
      %v889 = vmul.f32 %v886, %v888
      %v890 = vadd.f32 %v886, %v889
      %vm891 = vweird.f32 %v885
      %vm892 = vweird.f32 %v886
      %vm893 = vmor %vm891, %vm892
      %v894 = vsel %vm893, %v886, %v890
      %v895 = vand.u32 2147483647, %v885
      %vm896 = vcmp.eq.f32.partialorder %v895, 8.507059e+37
      %v897 = vand.u32 %v885, 2147483648
      %v898 = vor.u32 1.1754944e-38, %v897
      %v899 = vsel %vm896, %v898, %v894
      %v900 = vld [vmem:[#allocation4 + $0x2] sm:$0x1]
      %902 = vset.pattern.permute.xlu0 0
      %903 = vperm.xlu0 %902, %v899
      %v904 = vpop.permute.xlu0 %903
      %v906 = vmul.f32 %v900, %v904
      %v907 = vsel %vm805, %v906, 0.0
      %908 = vadd.xlane.f32.xlu0 %v907
      %v909 = vpop.xlane.xlu0 %908
      %v910 = vmul.f32 %v909, %v815
      %v911 = vsub.f32 %v906, %v910
      %v912 = vmul.f32 %v911, %v911
      %v913 = vsel %vm805, %v912, 0.0
      %914 = vadd.xlane.f32.xlu0 %v913
      %v915 = vpop.xlane.xlu0 %914
      %v916 = vmul.f32 %v915, %v815
      %v917 = vadd.f32 %v916, 1e-05
      %v918 = vrsqrt.pop %v917
      %v919 = vmul.f32 %v918, %v917
      %v920 = vmul.f32 %v919, %v918
      %v921 = vmul.f32 0.5, %v920
      %v922 = vsub.f32 1.5, %v921
      %v923 = vmul.f32 %v918, %v922
      %vm924 = vweird.f32 %v917
      %vm925 = vweird.f32 %v918
      %vm926 = vmor %vm924, %vm925
      %v927 = vsel %vm926, %v918, %v923
      %v928 = vmul.f32 %v911, %v927
      %v929 = vmul.f32 %v928, %v835
      %v930 = vadd.f32 %v929, %v837
      %v932 = vrot.slane %v930, 7
      %v934 = vsel %vm805, %v884, %v932
      %v935 = vld [vmem:[#allocation14] sm:$0x3]
      %v936 = vperm.slane %v838, 0
      %v937 = vmul.f32 %v936, %v935
      %v938 = vsel %vm696, %v937, 0.0
      %939 = vadd.xlane.f32.xlu0 %v938
      %v940 = vpop.xlane.xlu0 %939
      %v941 = vld [vmem:[%s9] sm:$0x3]
      %v942 = vadd.f32 %v940, %v941
      %944 = vset.pattern.permute.xlu0 0
      %945 = vperm.xlu0 %944, %v942
      %v946 = vpop.permute.xlu0 %945
      %v948 = vmul.f32 %v946, %v934
      %v949 = vsel %vm696, %v948, 0.0
      %v950 = vrot.slane %v949, 4
      %v951 = vadd.f32 %v949, %v950
      %v952 = vrot.slane %v951, 2
      %v953 = vadd.f32 %v951, %v952
      %v954 = vrot.slane %v953, 1
      %v955 = vadd.f32 %v953, %v954
      %v956 = vadd.f32 %v838, %v955
      %v957 = vmul.f32 %v956, 0.5
      %v958 = vld [vmem:[#allocation16] sm:$0xff]
      %v959 = vld [vmem:[#allocation16 + $0x8] sm:$0xff]
      %v960 = vld [vmem:[#allocation16 + $0x10] sm:$0xff]
      %v961 = vld [vmem:[#allocation16 + $0x18] sm:$0xff]
      %v962 = vld [vmem:[#allocation16 + $0x20] sm:$0xff]
      %v963 = vld [vmem:[#allocation16 + $0x28] sm:$0xff]
      %v964 = vld [vmem:[#allocation16 + $0x30] sm:$0xff]
      %v965 = vld [vmem:[#allocation16 + $0x38] sm:$0xff]
      %v966 = vld [vmem:[#allocation16 + $0x40] sm:$0xff]
      %v967 = vld [vmem:[#allocation16 + $0x48] sm:$0xff]
      %v968 = vld [vmem:[#allocation16 + $0x50] sm:$0xff]
      %v969 = vld [vmem:[#allocation16 + $0x58] sm:$0xff]
      %v970 = vld [vmem:[#allocation16 + $0x60] sm:$0xff]
      %v971 = vld [vmem:[#allocation16 + $0x68] sm:$0xff]
      %v972 = vld [vmem:[#allocation16 + $0x70] sm:$0xff]
      %v973 = vld [vmem:[#allocation16 + $0x78] sm:$0xff]
      %v974 = vld [vmem:[#allocation17] sm:$0x1]
      %975 = vmatpush.msra.mxu0 %v973
      %976 = vmatpush.msra.mxu0 %v972
      %977 = vmatpush.msra.mxu0 %v971
      %978 = vmatpush.msra.mxu0 %v970
      %979 = vmatpush.msra.mxu0 %v969
      %980 = vmatpush.msra.mxu0 %v968
      %981 = vmatpush.msra.mxu0 %v967
      %982 = vmatpush.msra.mxu0 %v966
      %983 = vmatpush.msra.mxu0 %v965
      %984 = vmatpush.msra.mxu0 %v964
      %985 = vmatpush.msra.mxu0 %v963
      %986 = vmatpush.msra.mxu0 %v962
      %987 = vmatpush.msra.mxu0 %v961
      %988 = vmatpush.msra.mxu0 %v960
      %989 = vmatpush.msra.mxu0 %v959
      %990 = vmatpush.msra.mxu0 %v958
      %991 = vmatmul.f32.gmra.mxu0 %v957
      %v992 = vpop.f32.mrf.mxu0
      %v993 = vadd.f32 %v974, %v992
      %994 = vdwg.mxu0
      %995 = vst [vmem:[#allocation19] sm:$0x1] %v993
    $region89: #{_forward.1} parent=1 // pred_fallthru
      _
    // Predicated region
    $region90: #{_forward.1} parent=1 // pred_check
      _
    $region91: #{_forward.1} parent=1 // pred_check_branch
      %997 = sbr.rel (0) target = $region93
    $region92: #{_forward.1} parent=1 // pred_region
      %999 = vsyncadd [#allocation7], 0
      %s1001 = sshll.u32 [#allocation19], 4
      %s1002 = int_to_ptr.vmem [resolvable:$true] %s1001
      %s1003 = sshll.u32 %s12, 4
      %s1004 = int_to_ptr.hbm [resolvable:$true] %s1003
      %1006 = dma.vmem_to_hbm [thread:$0]  %s1002, 16, %s1004, [#allocation7]
    $region93: #{_forward.1} parent=1 // pred_fallthru
      _
    // Predicated region
    $region94: #{_forward.1} parent=1 // pred_check
      _
    $region95: #{_forward.1} parent=1 // pred_check_branch
      %1008 = sbr.rel (0) target = $region97
    $region96: #{_forward.1} parent=1 // pred_region
      %1010 = dma.done [#allocation7], 16
    $region97: #{_forward.1} parent=1 // pred_fallthru
      _
    %1011 = vsyncpa [#allocation6], 1
    %1012 = vsyncpa [#allocation9], 1
    %1013 = vsyncpa [#allocation12], 1
    %1014 = vsyncpa [#allocation15], 1
    %1015 = vsyncpa [#allocation18], 1
    %1016 = vsyncpa [#allocation7], 1

</llo_original>
